<compile_context>
chip_gen: v5e
topology: v5e:2x2
jax: 0.10.0
libtpu: 0.0.40
codegen_flags: <defaults>
</compile_context>

<pallas_src>
import functools

import jax
import jax.numpy as jnp
from jax.experimental import pallas as pl
from jax.experimental.pallas import tpu as pltpu

EPS = 1e-8
B_BLK = 256  # batch elements per grid step (lane axis); 128-256 keeps MGS in-register


def _nan_to_zero(x):
    # torch.nan_to_num: nan -> 0, +-inf -> fmax/fmin.  In this kernel the divisions
    # are v * 1/(norm + eps) with |v| <= norm, so the result is always in [-1, 1]
    # for finite inputs and only the nan -> 0 branch can ever matter.
    return jnp.where(jnp.isnan(x), jnp.float32(0.0), x)


def synergies_kernel(x_ref, w1t_ref, b1t_ref, w3_ref, out_ref, *, a_dim, dout):
    # ---- fused dynamics hidden layer, transposed: batch on lanes -------------
    # x_ref:   (O+A, B_BLK)   [obs; act].T
    # w1t_ref: (H, O+A)       W1.T
    # b1t_ref: (H, 1)
    z = jnp.dot(w1t_ref[...], x_ref[...],
                preferred_element_type=jnp.float32) + b1t_ref[...]     # (H, B)
    h = jnp.tanh(z)
    s = 1.0 - h * h                                                     # (H, B) = tanh'(z)

    # ---- whole Jacobian block in one MXU push --------------------------------
    # w3_ref: (Dout*A, H) with w3[j*A + a, h] = W2[h, j] * W1a[a, h]
    # V[j*A + a, b] = F_b[j, a] = (F_b.T)[a, j]
    V = jnp.dot(w3_ref[...], s, preferred_element_type=jnp.float32)    # (Dout*A, B)

    # columns of the per-element (A, Dout) matrix, batched over the lane axis
    cols = [V[j * a_dim:(j + 1) * a_dim, :] for j in range(dout)]       # each (A, B)

    # ---- modified Gram-Schmidt, vectorized over batch lanes ------------------
    for i in range(dout - 1):
        v = cols[i]
        norm = jnp.sqrt(jnp.sum(v * v, axis=0, keepdims=True))          # (1, B)
        u = _nan_to_zero(v * (1.0 / (norm + EPS)))                      # (A, B)
        for j in range(i + 1, dout):                                    # mask: only j > i
            w = jnp.sum(u * cols[j], axis=0, keepdims=True)             # (1, B)
            cols[j] = cols[j] - u * w

    # ---- final column normalization + lane-dense store ------------------------
    for j in range(dout):
        c = cols[j]
        norm = jnp.sqrt(jnp.sum(c * c, axis=0, keepdims=True))          # (1, B)
        out_ref[j * a_dim:(j + 1) * a_dim, :] = _nan_to_zero(c * (1.0 / (norm + EPS)))


def synergies_forward(lin, obs, params, *, b_blk=B_BLK):
    lin = lin.astype(jnp.float32)
    obs = obs.astype(jnp.float32)
    B, A = lin.shape
    _, O = obs.shape
    w1o = params["w1o"].astype(jnp.float32)    # (O, H)
    w1a = params["w1a"].astype(jnp.float32)    # (A, H)
    b1 = params["b1"].astype(jnp.float32)      # (1, H)
    w2 = params["w2"].astype(jnp.float32)      # (H, Dout)
    H = w1o.shape[1]
    Dout = w2.shape[1]

    # ---- wrapper-side layout plumbing (tiny XLA ops) --------------------------
    x = jnp.concatenate([obs, lin], axis=1)                              # (B, O+A)
    Bp = ((B + b_blk - 1) // b_blk) * b_blk
    if Bp != B:
        x = jnp.pad(x, ((0, Bp - B), (0, 0)))                            # zero-pad batch
    xT = x.T                                                             # (O+A, Bp)

    w1t = jnp.concatenate([w1o, w1a], axis=0).T                          # (H, O+A)
    b1t = b1.T                                                           # (H, 1)
    # W3[j*A + a, h] = W2[h, j] * W1a[a, h]  ->  Jacobian as a single matmul
    w3 = (w2.T[:, None, :] * w1a[None, :, :]).reshape(Dout * A, H)       # (Dout*A, H)

    kernel = functools.partial(synergies_kernel, a_dim=A, dout=Dout)

    raw = pl.pallas_call(
        kernel,
        out_shape=jax.ShapeDtypeStruct((Dout * A, Bp), jnp.float32),
        grid_spec=pltpu.PrefetchScalarGridSpec(
            num_scalar_prefetch=0,
            grid=(Bp // b_blk,),
            in_specs=[
                pl.BlockSpec((O + A, b_blk), lambda b: (0, b)),          # xT block
                pl.BlockSpec((H, O + A), lambda b: (0, 0)),              # W1.T (resident)
                pl.BlockSpec((H, 1), lambda b: (0, 0)),                  # b1.T
                pl.BlockSpec((Dout * A, H), lambda b: (0, 0)),           # W3
            ],
            out_specs=pl.BlockSpec((Dout * A, b_blk), lambda b: (0, b)),
        ),
        compiler_params=pltpu.CompilerParams(
            dimension_semantics=("parallel",)),
    )(xT, w1t, b1t, w3)

    # (Dout*A, Bp) -> (Bp, A, Dout) -> strip batch padding
    out = jnp.transpose(raw.reshape(Dout, A, Bp), (2, 1, 0))
    return out[:B]


# ---------------- pure-JAX reference (jacrev + Gram-Schmidt), for validation ----------------
def _ref_gram_schmidt(V):
    n = V.shape[1]
    for i in range(n - 1):
        v_i = V[:, i]
        norm = jnp.linalg.norm(v_i)
        u = jnp.nan_to_num(v_i / (norm + EPS))
        weights = u @ V
        mask = jnp.arange(n) > i
        masked = jnp.where(mask, weights, 0.0)
        V = V - jnp.outer(u, masked)
    vec_norm = jnp.linalg.norm(V, axis=0, keepdims=True)
    return jnp.nan_to_num(V / (vec_norm + EPS))


def _ref_forward(lin, obs, params):
    W1 = jnp.concatenate([params["w1o"], params["w1a"]], axis=0)
    b1 = params["b1"][0]
    W2, b2 = params["w2"], params["b2"]

    def dyn_mean(a, o):
        x = jnp.concatenate([o, a])
        h = jnp.tanh(x @ W1 + b1)
        return h @ W2 + b2

    def single(a, o):
        F = jax.jacrev(dyn_mean)(a, o)      # [Dout, A]
        return _ref_gram_schmidt(F.T)       # [A, Dout]

    return jax.vmap(single)(lin, obs)


if __name__ == "__main__":
    B, A, O, H, Dout = 2, 8, 16, 32, 8

    key = jax.random.PRNGKey(0)
    k1, k2, k3, k4, k5, k6, k7 = jax.random.split(key, 7)

    params = {
        "w1o": jax.random.normal(k1, (O, H), jnp.float32) * 0.3,
        "w1a": jax.random.normal(k2, (A, H), jnp.float32) * 0.3,
        "b1": jax.random.normal(k3, (1, H), jnp.float32) * 0.1,
        "w2": jax.random.normal(k4, (H, Dout), jnp.float32) * 0.3,
        "b2": jax.random.normal(k5, (Dout,), jnp.float32) * 0.1,  # not used by Jacobian
    }

    lin = jax.random.normal(k6, (B, A), jnp.float32)
    obs = jax.random.normal(k7, (B, O), jnp.float32)

    out = synergies_forward(lin, obs, params)
    out = jax.block_until_ready(out)
    ref = jax.block_until_ready(_ref_forward(lin, obs, params))
    assert out.shape == (B, A, Dout)
    # tolerance is loose enough to absorb MXU default-precision / tanh-approx
    # differences between the kernel and the XLA jacrev reference.
    assert jnp.allclose(out, ref, atol=1e-3, rtol=1e-3), "mismatch vs jacrev reference"

    # also exercise the multi-block grid + batch-padding path (B not multiple of B_BLK)
    B2 = 260
    k8, k9 = jax.random.split(jax.random.PRNGKey(1))
    lin2 = jax.random.normal(k8, (B2, A), jnp.float32)
    obs2 = jax.random.normal(k9, (B2, O), jnp.float32)
    out2 = jax.block_until_ready(synergies_forward(lin2, obs2, params))
    ref2 = jax.block_until_ready(_ref_forward(lin2, obs2, params))
    assert out2.shape == (B2, A, Dout)
    assert jnp.allclose(out2, ref2, atol=1e-3, rtol=1e-3), "mismatch on multi-block batch"

    print("KERNEL_OK")
</pallas_src>

<mosaic_0001>
module attributes {stable_mosaic.version = 11 : i64} {
  func.func @synergies_kernel(%arg0: i32, %arg1: memref<24x256xf32, #tpu.memory_space<vmem>>, %arg2: memref<32x24xf32, #tpu.memory_space<vmem>>, %arg3: memref<32x1xf32, #tpu.memory_space<vmem>>, %arg4: memref<64x32xf32, #tpu.memory_space<vmem>>, %arg5: memref<64x256xf32, #tpu.memory_space<vmem>>) attributes {dimension_semantics = [#tpu.dimension_semantics<parallel>], iteration_bounds = array<i64: 1>, scalar_prefetch = 0 : i64, scratch_operands = 0 : i64, tpu.core_type = #tpu.core_type<tc>, window_params = [{transform_indices = @transform_0, window_bounds = array<i64: 24, 256>}, {pipeline_mode = #tpu.pipeline_mode<synchronous>, transform_indices = @transform_1, window_bounds = array<i64: 32, 24>}, {pipeline_mode = #tpu.pipeline_mode<synchronous>, transform_indices = @transform_2, window_bounds = array<i64: 32, 1>}, {pipeline_mode = #tpu.pipeline_mode<synchronous>, transform_indices = @transform_3, window_bounds = array<i64: 64, 32>}, {transform_indices = @transform_4, window_bounds = array<i64: 64, 256>}]} {
    %c0 = arith.constant 0 : index
    %c0_0 = arith.constant 0 : index
    %0 = vector.load %arg2[%c0, %c0_0] : memref<32x24xf32, #tpu.memory_space<vmem>>, vector<32x24xf32>
    %c0_1 = arith.constant 0 : index
    %c0_2 = arith.constant 0 : index
    %1 = vector.load %arg1[%c0_1, %c0_2] : memref<24x256xf32, #tpu.memory_space<vmem>>, vector<24x256xf32>
    %cst = arith.constant dense<0.000000e+00> : vector<32x256xf32>
    %2 = tpu.matmul %0, %1, %cst {dimension_numbers = #tpu.dot_dimension_numbers<[1], [0], [0], [1], [0, 0, 1, 1], [], []>} : vector<32x24xf32>, vector<24x256xf32>, vector<32x256xf32> -> vector<32x256xf32>
    %c0_3 = arith.constant 0 : index
    %c0_4 = arith.constant 0 : index
    %3 = vector.load %arg3[%c0_3, %c0_4] : memref<32x1xf32, #tpu.memory_space<vmem>>, vector<32x1xf32>
    %4 = vector.broadcast %3 : vector<32x1xf32> to vector<32x256xf32>
    %5 = arith.addf %2, %4 : vector<32x256xf32>
    %6 = math.tanh %5 : vector<32x256xf32>
    %7 = arith.mulf %6, %6 : vector<32x256xf32>
    %cst_5 = arith.constant 1.000000e+00 : f32
    %8 = vector.broadcast %cst_5 : f32 to vector<32x256xf32>
    %9 = arith.subf %8, %7 : vector<32x256xf32>
    %c0_6 = arith.constant 0 : index
    %c0_7 = arith.constant 0 : index
    %10 = vector.load %arg4[%c0_6, %c0_7] : memref<64x32xf32, #tpu.memory_space<vmem>>, vector<64x32xf32>
    %cst_8 = arith.constant dense<0.000000e+00> : vector<64x256xf32>
    %11 = tpu.matmul %10, %9, %cst_8 {dimension_numbers = #tpu.dot_dimension_numbers<[1], [0], [0], [1], [0, 0, 1, 1], [], []>} : vector<64x32xf32>, vector<32x256xf32>, vector<64x256xf32> -> vector<64x256xf32>
    %12 = vector.extract_strided_slice %11 {offsets = [0, 0], sizes = [8, 256], strides = [1, 1]} : vector<64x256xf32> to vector<8x256xf32>
    %13 = vector.extract_strided_slice %11 {offsets = [8, 0], sizes = [8, 256], strides = [1, 1]} : vector<64x256xf32> to vector<8x256xf32>
    %14 = vector.extract_strided_slice %11 {offsets = [16, 0], sizes = [8, 256], strides = [1, 1]} : vector<64x256xf32> to vector<8x256xf32>
    %15 = vector.extract_strided_slice %11 {offsets = [24, 0], sizes = [8, 256], strides = [1, 1]} : vector<64x256xf32> to vector<8x256xf32>
    %16 = vector.extract_strided_slice %11 {offsets = [32, 0], sizes = [8, 256], strides = [1, 1]} : vector<64x256xf32> to vector<8x256xf32>
    %17 = vector.extract_strided_slice %11 {offsets = [40, 0], sizes = [8, 256], strides = [1, 1]} : vector<64x256xf32> to vector<8x256xf32>
    %18 = vector.extract_strided_slice %11 {offsets = [48, 0], sizes = [8, 256], strides = [1, 1]} : vector<64x256xf32> to vector<8x256xf32>
    %19 = vector.extract_strided_slice %11 {offsets = [56, 0], sizes = [8, 256], strides = [1, 1]} : vector<64x256xf32> to vector<8x256xf32>
    %20 = arith.mulf %12, %12 : vector<8x256xf32>
    %cst_9 = arith.constant dense<0.000000e+00> : vector<256xf32>
    %21 = vector.multi_reduction <add>, %20, %cst_9 [0] : vector<8x256xf32> to vector<256xf32>
    %22 = vector.shape_cast %21 : vector<256xf32> to vector<1x256xf32>
    %23 = math.sqrt %22 : vector<1x256xf32>
    %cst_10 = arith.constant 9.99999993E-9 : f32
    %24 = vector.broadcast %cst_10 : f32 to vector<1x256xf32>
    %25 = arith.addf %23, %24 : vector<1x256xf32>
    %cst_11 = arith.constant 1.000000e+00 : f32
    %26 = vector.broadcast %cst_11 : f32 to vector<1x256xf32>
    %27 = arith.divf %26, %25 : vector<1x256xf32>
    %28 = vector.broadcast %27 : vector<1x256xf32> to vector<8x256xf32>
    %29 = arith.mulf %12, %28 : vector<8x256xf32>
    %30 = arith.cmpf one, %29, %29 : vector<8x256xf32>
    %cst_12 = arith.constant 0.000000e+00 : f32
    %31 = vector.broadcast %cst_12 : f32 to vector<8x256xf32>
    %32 = arith.select %30, %31, %29 : vector<8x256xi1>, vector<8x256xf32>
    %33 = arith.mulf %32, %13 : vector<8x256xf32>
    %cst_13 = arith.constant dense<0.000000e+00> : vector<256xf32>
    %34 = vector.multi_reduction <add>, %33, %cst_13 [0] : vector<8x256xf32> to vector<256xf32>
    %35 = vector.shape_cast %34 : vector<256xf32> to vector<1x256xf32>
    %36 = vector.broadcast %35 : vector<1x256xf32> to vector<8x256xf32>
    %37 = arith.mulf %32, %36 : vector<8x256xf32>
    %38 = arith.subf %13, %37 : vector<8x256xf32>
    %39 = arith.mulf %32, %14 : vector<8x256xf32>
    %cst_14 = arith.constant dense<0.000000e+00> : vector<256xf32>
    %40 = vector.multi_reduction <add>, %39, %cst_14 [0] : vector<8x256xf32> to vector<256xf32>
    %41 = vector.shape_cast %40 : vector<256xf32> to vector<1x256xf32>
    %42 = vector.broadcast %41 : vector<1x256xf32> to vector<8x256xf32>
    %43 = arith.mulf %32, %42 : vector<8x256xf32>
    %44 = arith.subf %14, %43 : vector<8x256xf32>
    %45 = arith.mulf %32, %15 : vector<8x256xf32>
    %cst_15 = arith.constant dense<0.000000e+00> : vector<256xf32>
    %46 = vector.multi_reduction <add>, %45, %cst_15 [0] : vector<8x256xf32> to vector<256xf32>
    %47 = vector.shape_cast %46 : vector<256xf32> to vector<1x256xf32>
    %48 = vector.broadcast %47 : vector<1x256xf32> to vector<8x256xf32>
    %49 = arith.mulf %32, %48 : vector<8x256xf32>
    %50 = arith.subf %15, %49 : vector<8x256xf32>
    %51 = arith.mulf %32, %16 : vector<8x256xf32>
    %cst_16 = arith.constant dense<0.000000e+00> : vector<256xf32>
    %52 = vector.multi_reduction <add>, %51, %cst_16 [0] : vector<8x256xf32> to vector<256xf32>
    %53 = vector.shape_cast %52 : vector<256xf32> to vector<1x256xf32>
    %54 = vector.broadcast %53 : vector<1x256xf32> to vector<8x256xf32>
    %55 = arith.mulf %32, %54 : vector<8x256xf32>
    %56 = arith.subf %16, %55 : vector<8x256xf32>
    %57 = arith.mulf %32, %17 : vector<8x256xf32>
    %cst_17 = arith.constant dense<0.000000e+00> : vector<256xf32>
    %58 = vector.multi_reduction <add>, %57, %cst_17 [0] : vector<8x256xf32> to vector<256xf32>
    %59 = vector.shape_cast %58 : vector<256xf32> to vector<1x256xf32>
    %60 = vector.broadcast %59 : vector<1x256xf32> to vector<8x256xf32>
    %61 = arith.mulf %32, %60 : vector<8x256xf32>
    %62 = arith.subf %17, %61 : vector<8x256xf32>
    %63 = arith.mulf %32, %18 : vector<8x256xf32>
    %cst_18 = arith.constant dense<0.000000e+00> : vector<256xf32>
    %64 = vector.multi_reduction <add>, %63, %cst_18 [0] : vector<8x256xf32> to vector<256xf32>
    %65 = vector.shape_cast %64 : vector<256xf32> to vector<1x256xf32>
    %66 = vector.broadcast %65 : vector<1x256xf32> to vector<8x256xf32>
    %67 = arith.mulf %32, %66 : vector<8x256xf32>
    %68 = arith.subf %18, %67 : vector<8x256xf32>
    %69 = arith.mulf %32, %19 : vector<8x256xf32>
    %cst_19 = arith.constant dense<0.000000e+00> : vector<256xf32>
    %70 = vector.multi_reduction <add>, %69, %cst_19 [0] : vector<8x256xf32> to vector<256xf32>
    %71 = vector.shape_cast %70 : vector<256xf32> to vector<1x256xf32>
    %72 = vector.broadcast %71 : vector<1x256xf32> to vector<8x256xf32>
    %73 = arith.mulf %32, %72 : vector<8x256xf32>
    %74 = arith.subf %19, %73 : vector<8x256xf32>
    %75 = arith.mulf %38, %38 : vector<8x256xf32>
    %cst_20 = arith.constant dense<0.000000e+00> : vector<256xf32>
    %76 = vector.multi_reduction <add>, %75, %cst_20 [0] : vector<8x256xf32> to vector<256xf32>
    %77 = vector.shape_cast %76 : vector<256xf32> to vector<1x256xf32>
    %78 = math.sqrt %77 : vector<1x256xf32>
    %cst_21 = arith.constant 9.99999993E-9 : f32
    %79 = vector.broadcast %cst_21 : f32 to vector<1x256xf32>
    %80 = arith.addf %78, %79 : vector<1x256xf32>
    %cst_22 = arith.constant 1.000000e+00 : f32
    %81 = vector.broadcast %cst_22 : f32 to vector<1x256xf32>
    %82 = arith.divf %81, %80 : vector<1x256xf32>
    %83 = vector.broadcast %82 : vector<1x256xf32> to vector<8x256xf32>
    %84 = arith.mulf %38, %83 : vector<8x256xf32>
    %85 = arith.cmpf one, %84, %84 : vector<8x256xf32>
    %cst_23 = arith.constant 0.000000e+00 : f32
    %86 = vector.broadcast %cst_23 : f32 to vector<8x256xf32>
    %87 = arith.select %85, %86, %84 : vector<8x256xi1>, vector<8x256xf32>
    %88 = arith.mulf %87, %44 : vector<8x256xf32>
    %cst_24 = arith.constant dense<0.000000e+00> : vector<256xf32>
    %89 = vector.multi_reduction <add>, %88, %cst_24 [0] : vector<8x256xf32> to vector<256xf32>
    %90 = vector.shape_cast %89 : vector<256xf32> to vector<1x256xf32>
    %91 = vector.broadcast %90 : vector<1x256xf32> to vector<8x256xf32>
    %92 = arith.mulf %87, %91 : vector<8x256xf32>
    %93 = arith.subf %44, %92 : vector<8x256xf32>
    %94 = arith.mulf %87, %50 : vector<8x256xf32>
    %cst_25 = arith.constant dense<0.000000e+00> : vector<256xf32>
    %95 = vector.multi_reduction <add>, %94, %cst_25 [0] : vector<8x256xf32> to vector<256xf32>
    %96 = vector.shape_cast %95 : vector<256xf32> to vector<1x256xf32>
    %97 = vector.broadcast %96 : vector<1x256xf32> to vector<8x256xf32>
    %98 = arith.mulf %87, %97 : vector<8x256xf32>
    %99 = arith.subf %50, %98 : vector<8x256xf32>
    %100 = arith.mulf %87, %56 : vector<8x256xf32>
    %cst_26 = arith.constant dense<0.000000e+00> : vector<256xf32>
    %101 = vector.multi_reduction <add>, %100, %cst_26 [0] : vector<8x256xf32> to vector<256xf32>
    %102 = vector.shape_cast %101 : vector<256xf32> to vector<1x256xf32>
    %103 = vector.broadcast %102 : vector<1x256xf32> to vector<8x256xf32>
    %104 = arith.mulf %87, %103 : vector<8x256xf32>
    %105 = arith.subf %56, %104 : vector<8x256xf32>
    %106 = arith.mulf %87, %62 : vector<8x256xf32>
    %cst_27 = arith.constant dense<0.000000e+00> : vector<256xf32>
    %107 = vector.multi_reduction <add>, %106, %cst_27 [0] : vector<8x256xf32> to vector<256xf32>
    %108 = vector.shape_cast %107 : vector<256xf32> to vector<1x256xf32>
    %109 = vector.broadcast %108 : vector<1x256xf32> to vector<8x256xf32>
    %110 = arith.mulf %87, %109 : vector<8x256xf32>
    %111 = arith.subf %62, %110 : vector<8x256xf32>
    %112 = arith.mulf %87, %68 : vector<8x256xf32>
    %cst_28 = arith.constant dense<0.000000e+00> : vector<256xf32>
    %113 = vector.multi_reduction <add>, %112, %cst_28 [0] : vector<8x256xf32> to vector<256xf32>
    %114 = vector.shape_cast %113 : vector<256xf32> to vector<1x256xf32>
    %115 = vector.broadcast %114 : vector<1x256xf32> to vector<8x256xf32>
    %116 = arith.mulf %87, %115 : vector<8x256xf32>
    %117 = arith.subf %68, %116 : vector<8x256xf32>
    %118 = arith.mulf %87, %74 : vector<8x256xf32>
    %cst_29 = arith.constant dense<0.000000e+00> : vector<256xf32>
    %119 = vector.multi_reduction <add>, %118, %cst_29 [0] : vector<8x256xf32> to vector<256xf32>
    %120 = vector.shape_cast %119 : vector<256xf32> to vector<1x256xf32>
    %121 = vector.broadcast %120 : vector<1x256xf32> to vector<8x256xf32>
    %122 = arith.mulf %87, %121 : vector<8x256xf32>
    %123 = arith.subf %74, %122 : vector<8x256xf32>
    %124 = arith.mulf %93, %93 : vector<8x256xf32>
    %cst_30 = arith.constant dense<0.000000e+00> : vector<256xf32>
    %125 = vector.multi_reduction <add>, %124, %cst_30 [0] : vector<8x256xf32> to vector<256xf32>
    %126 = vector.shape_cast %125 : vector<256xf32> to vector<1x256xf32>
    %127 = math.sqrt %126 : vector<1x256xf32>
    %cst_31 = arith.constant 9.99999993E-9 : f32
    %128 = vector.broadcast %cst_31 : f32 to vector<1x256xf32>
    %129 = arith.addf %127, %128 : vector<1x256xf32>
    %cst_32 = arith.constant 1.000000e+00 : f32
    %130 = vector.broadcast %cst_32 : f32 to vector<1x256xf32>
    %131 = arith.divf %130, %129 : vector<1x256xf32>
    %132 = vector.broadcast %131 : vector<1x256xf32> to vector<8x256xf32>
    %133 = arith.mulf %93, %132 : vector<8x256xf32>
    %134 = arith.cmpf one, %133, %133 : vector<8x256xf32>
    %cst_33 = arith.constant 0.000000e+00 : f32
    %135 = vector.broadcast %cst_33 : f32 to vector<8x256xf32>
    %136 = arith.select %134, %135, %133 : vector<8x256xi1>, vector<8x256xf32>
    %137 = arith.mulf %136, %99 : vector<8x256xf32>
    %cst_34 = arith.constant dense<0.000000e+00> : vector<256xf32>
    %138 = vector.multi_reduction <add>, %137, %cst_34 [0] : vector<8x256xf32> to vector<256xf32>
    %139 = vector.shape_cast %138 : vector<256xf32> to vector<1x256xf32>
    %140 = vector.broadcast %139 : vector<1x256xf32> to vector<8x256xf32>
    %141 = arith.mulf %136, %140 : vector<8x256xf32>
    %142 = arith.subf %99, %141 : vector<8x256xf32>
    %143 = arith.mulf %136, %105 : vector<8x256xf32>
    %cst_35 = arith.constant dense<0.000000e+00> : vector<256xf32>
    %144 = vector.multi_reduction <add>, %143, %cst_35 [0] : vector<8x256xf32> to vector<256xf32>
    %145 = vector.shape_cast %144 : vector<256xf32> to vector<1x256xf32>
    %146 = vector.broadcast %145 : vector<1x256xf32> to vector<8x256xf32>
    %147 = arith.mulf %136, %146 : vector<8x256xf32>
    %148 = arith.subf %105, %147 : vector<8x256xf32>
    %149 = arith.mulf %136, %111 : vector<8x256xf32>
    %cst_36 = arith.constant dense<0.000000e+00> : vector<256xf32>
    %150 = vector.multi_reduction <add>, %149, %cst_36 [0] : vector<8x256xf32> to vector<256xf32>
    %151 = vector.shape_cast %150 : vector<256xf32> to vector<1x256xf32>
    %152 = vector.broadcast %151 : vector<1x256xf32> to vector<8x256xf32>
    %153 = arith.mulf %136, %152 : vector<8x256xf32>
    %154 = arith.subf %111, %153 : vector<8x256xf32>
    %155 = arith.mulf %136, %117 : vector<8x256xf32>
    %cst_37 = arith.constant dense<0.000000e+00> : vector<256xf32>
    %156 = vector.multi_reduction <add>, %155, %cst_37 [0] : vector<8x256xf32> to vector<256xf32>
    %157 = vector.shape_cast %156 : vector<256xf32> to vector<1x256xf32>
    %158 = vector.broadcast %157 : vector<1x256xf32> to vector<8x256xf32>
    %159 = arith.mulf %136, %158 : vector<8x256xf32>
    %160 = arith.subf %117, %159 : vector<8x256xf32>
    %161 = arith.mulf %136, %123 : vector<8x256xf32>
    %cst_38 = arith.constant dense<0.000000e+00> : vector<256xf32>
    %162 = vector.multi_reduction <add>, %161, %cst_38 [0] : vector<8x256xf32> to vector<256xf32>
    %163 = vector.shape_cast %162 : vector<256xf32> to vector<1x256xf32>
    %164 = vector.broadcast %163 : vector<1x256xf32> to vector<8x256xf32>
    %165 = arith.mulf %136, %164 : vector<8x256xf32>
    %166 = arith.subf %123, %165 : vector<8x256xf32>
    %167 = arith.mulf %142, %142 : vector<8x256xf32>
    %cst_39 = arith.constant dense<0.000000e+00> : vector<256xf32>
    %168 = vector.multi_reduction <add>, %167, %cst_39 [0] : vector<8x256xf32> to vector<256xf32>
    %169 = vector.shape_cast %168 : vector<256xf32> to vector<1x256xf32>
    %170 = math.sqrt %169 : vector<1x256xf32>
    %cst_40 = arith.constant 9.99999993E-9 : f32
    %171 = vector.broadcast %cst_40 : f32 to vector<1x256xf32>
    %172 = arith.addf %170, %171 : vector<1x256xf32>
    %cst_41 = arith.constant 1.000000e+00 : f32
    %173 = vector.broadcast %cst_41 : f32 to vector<1x256xf32>
    %174 = arith.divf %173, %172 : vector<1x256xf32>
    %175 = vector.broadcast %174 : vector<1x256xf32> to vector<8x256xf32>
    %176 = arith.mulf %142, %175 : vector<8x256xf32>
    %177 = arith.cmpf one, %176, %176 : vector<8x256xf32>
    %cst_42 = arith.constant 0.000000e+00 : f32
    %178 = vector.broadcast %cst_42 : f32 to vector<8x256xf32>
    %179 = arith.select %177, %178, %176 : vector<8x256xi1>, vector<8x256xf32>
    %180 = arith.mulf %179, %148 : vector<8x256xf32>
    %cst_43 = arith.constant dense<0.000000e+00> : vector<256xf32>
    %181 = vector.multi_reduction <add>, %180, %cst_43 [0] : vector<8x256xf32> to vector<256xf32>
    %182 = vector.shape_cast %181 : vector<256xf32> to vector<1x256xf32>
    %183 = vector.broadcast %182 : vector<1x256xf32> to vector<8x256xf32>
    %184 = arith.mulf %179, %183 : vector<8x256xf32>
    %185 = arith.subf %148, %184 : vector<8x256xf32>
    %186 = arith.mulf %179, %154 : vector<8x256xf32>
    %cst_44 = arith.constant dense<0.000000e+00> : vector<256xf32>
    %187 = vector.multi_reduction <add>, %186, %cst_44 [0] : vector<8x256xf32> to vector<256xf32>
    %188 = vector.shape_cast %187 : vector<256xf32> to vector<1x256xf32>
    %189 = vector.broadcast %188 : vector<1x256xf32> to vector<8x256xf32>
    %190 = arith.mulf %179, %189 : vector<8x256xf32>
    %191 = arith.subf %154, %190 : vector<8x256xf32>
    %192 = arith.mulf %179, %160 : vector<8x256xf32>
    %cst_45 = arith.constant dense<0.000000e+00> : vector<256xf32>
    %193 = vector.multi_reduction <add>, %192, %cst_45 [0] : vector<8x256xf32> to vector<256xf32>
    %194 = vector.shape_cast %193 : vector<256xf32> to vector<1x256xf32>
    %195 = vector.broadcast %194 : vector<1x256xf32> to vector<8x256xf32>
    %196 = arith.mulf %179, %195 : vector<8x256xf32>
    %197 = arith.subf %160, %196 : vector<8x256xf32>
    %198 = arith.mulf %179, %166 : vector<8x256xf32>
    %cst_46 = arith.constant dense<0.000000e+00> : vector<256xf32>
    %199 = vector.multi_reduction <add>, %198, %cst_46 [0] : vector<8x256xf32> to vector<256xf32>
    %200 = vector.shape_cast %199 : vector<256xf32> to vector<1x256xf32>
    %201 = vector.broadcast %200 : vector<1x256xf32> to vector<8x256xf32>
    %202 = arith.mulf %179, %201 : vector<8x256xf32>
    %203 = arith.subf %166, %202 : vector<8x256xf32>
    %204 = arith.mulf %185, %185 : vector<8x256xf32>
    %cst_47 = arith.constant dense<0.000000e+00> : vector<256xf32>
    %205 = vector.multi_reduction <add>, %204, %cst_47 [0] : vector<8x256xf32> to vector<256xf32>
    %206 = vector.shape_cast %205 : vector<256xf32> to vector<1x256xf32>
    %207 = math.sqrt %206 : vector<1x256xf32>
    %cst_48 = arith.constant 9.99999993E-9 : f32
    %208 = vector.broadcast %cst_48 : f32 to vector<1x256xf32>
    %209 = arith.addf %207, %208 : vector<1x256xf32>
    %cst_49 = arith.constant 1.000000e+00 : f32
    %210 = vector.broadcast %cst_49 : f32 to vector<1x256xf32>
    %211 = arith.divf %210, %209 : vector<1x256xf32>
    %212 = vector.broadcast %211 : vector<1x256xf32> to vector<8x256xf32>
    %213 = arith.mulf %185, %212 : vector<8x256xf32>
    %214 = arith.cmpf one, %213, %213 : vector<8x256xf32>
    %cst_50 = arith.constant 0.000000e+00 : f32
    %215 = vector.broadcast %cst_50 : f32 to vector<8x256xf32>
    %216 = arith.select %214, %215, %213 : vector<8x256xi1>, vector<8x256xf32>
    %217 = arith.mulf %216, %191 : vector<8x256xf32>
    %cst_51 = arith.constant dense<0.000000e+00> : vector<256xf32>
    %218 = vector.multi_reduction <add>, %217, %cst_51 [0] : vector<8x256xf32> to vector<256xf32>
    %219 = vector.shape_cast %218 : vector<256xf32> to vector<1x256xf32>
    %220 = vector.broadcast %219 : vector<1x256xf32> to vector<8x256xf32>
    %221 = arith.mulf %216, %220 : vector<8x256xf32>
    %222 = arith.subf %191, %221 : vector<8x256xf32>
    %223 = arith.mulf %216, %197 : vector<8x256xf32>
    %cst_52 = arith.constant dense<0.000000e+00> : vector<256xf32>
    %224 = vector.multi_reduction <add>, %223, %cst_52 [0] : vector<8x256xf32> to vector<256xf32>
    %225 = vector.shape_cast %224 : vector<256xf32> to vector<1x256xf32>
    %226 = vector.broadcast %225 : vector<1x256xf32> to vector<8x256xf32>
    %227 = arith.mulf %216, %226 : vector<8x256xf32>
    %228 = arith.subf %197, %227 : vector<8x256xf32>
    %229 = arith.mulf %216, %203 : vector<8x256xf32>
    %cst_53 = arith.constant dense<0.000000e+00> : vector<256xf32>
    %230 = vector.multi_reduction <add>, %229, %cst_53 [0] : vector<8x256xf32> to vector<256xf32>
    %231 = vector.shape_cast %230 : vector<256xf32> to vector<1x256xf32>
    %232 = vector.broadcast %231 : vector<1x256xf32> to vector<8x256xf32>
    %233 = arith.mulf %216, %232 : vector<8x256xf32>
    %234 = arith.subf %203, %233 : vector<8x256xf32>
    %235 = arith.mulf %222, %222 : vector<8x256xf32>
    %cst_54 = arith.constant dense<0.000000e+00> : vector<256xf32>
    %236 = vector.multi_reduction <add>, %235, %cst_54 [0] : vector<8x256xf32> to vector<256xf32>
    %237 = vector.shape_cast %236 : vector<256xf32> to vector<1x256xf32>
    %238 = math.sqrt %237 : vector<1x256xf32>
    %cst_55 = arith.constant 9.99999993E-9 : f32
    %239 = vector.broadcast %cst_55 : f32 to vector<1x256xf32>
    %240 = arith.addf %238, %239 : vector<1x256xf32>
    %cst_56 = arith.constant 1.000000e+00 : f32
    %241 = vector.broadcast %cst_56 : f32 to vector<1x256xf32>
    %242 = arith.divf %241, %240 : vector<1x256xf32>
    %243 = vector.broadcast %242 : vector<1x256xf32> to vector<8x256xf32>
    %244 = arith.mulf %222, %243 : vector<8x256xf32>
    %245 = arith.cmpf one, %244, %244 : vector<8x256xf32>
    %cst_57 = arith.constant 0.000000e+00 : f32
    %246 = vector.broadcast %cst_57 : f32 to vector<8x256xf32>
    %247 = arith.select %245, %246, %244 : vector<8x256xi1>, vector<8x256xf32>
    %248 = arith.mulf %247, %228 : vector<8x256xf32>
    %cst_58 = arith.constant dense<0.000000e+00> : vector<256xf32>
    %249 = vector.multi_reduction <add>, %248, %cst_58 [0] : vector<8x256xf32> to vector<256xf32>
    %250 = vector.shape_cast %249 : vector<256xf32> to vector<1x256xf32>
    %251 = vector.broadcast %250 : vector<1x256xf32> to vector<8x256xf32>
    %252 = arith.mulf %247, %251 : vector<8x256xf32>
    %253 = arith.subf %228, %252 : vector<8x256xf32>
    %254 = arith.mulf %247, %234 : vector<8x256xf32>
    %cst_59 = arith.constant dense<0.000000e+00> : vector<256xf32>
    %255 = vector.multi_reduction <add>, %254, %cst_59 [0] : vector<8x256xf32> to vector<256xf32>
    %256 = vector.shape_cast %255 : vector<256xf32> to vector<1x256xf32>
    %257 = vector.broadcast %256 : vector<1x256xf32> to vector<8x256xf32>
    %258 = arith.mulf %247, %257 : vector<8x256xf32>
    %259 = arith.subf %234, %258 : vector<8x256xf32>
    %260 = arith.mulf %253, %253 : vector<8x256xf32>
    %cst_60 = arith.constant dense<0.000000e+00> : vector<256xf32>
    %261 = vector.multi_reduction <add>, %260, %cst_60 [0] : vector<8x256xf32> to vector<256xf32>
    %262 = vector.shape_cast %261 : vector<256xf32> to vector<1x256xf32>
    %263 = math.sqrt %262 : vector<1x256xf32>
    %cst_61 = arith.constant 9.99999993E-9 : f32
    %264 = vector.broadcast %cst_61 : f32 to vector<1x256xf32>
    %265 = arith.addf %263, %264 : vector<1x256xf32>
    %cst_62 = arith.constant 1.000000e+00 : f32
    %266 = vector.broadcast %cst_62 : f32 to vector<1x256xf32>
    %267 = arith.divf %266, %265 : vector<1x256xf32>
    %268 = vector.broadcast %267 : vector<1x256xf32> to vector<8x256xf32>
    %269 = arith.mulf %253, %268 : vector<8x256xf32>
    %270 = arith.cmpf one, %269, %269 : vector<8x256xf32>
    %cst_63 = arith.constant 0.000000e+00 : f32
    %271 = vector.broadcast %cst_63 : f32 to vector<8x256xf32>
    %272 = arith.select %270, %271, %269 : vector<8x256xi1>, vector<8x256xf32>
    %273 = arith.mulf %272, %259 : vector<8x256xf32>
    %cst_64 = arith.constant dense<0.000000e+00> : vector<256xf32>
    %274 = vector.multi_reduction <add>, %273, %cst_64 [0] : vector<8x256xf32> to vector<256xf32>
    %275 = vector.shape_cast %274 : vector<256xf32> to vector<1x256xf32>
    %276 = vector.broadcast %275 : vector<1x256xf32> to vector<8x256xf32>
    %277 = arith.mulf %272, %276 : vector<8x256xf32>
    %278 = arith.subf %259, %277 : vector<8x256xf32>
    %279 = arith.mulf %12, %12 : vector<8x256xf32>
    %cst_65 = arith.constant dense<0.000000e+00> : vector<256xf32>
    %280 = vector.multi_reduction <add>, %279, %cst_65 [0] : vector<8x256xf32> to vector<256xf32>
    %281 = vector.shape_cast %280 : vector<256xf32> to vector<1x256xf32>
    %282 = math.sqrt %281 : vector<1x256xf32>
    %cst_66 = arith.constant 9.99999993E-9 : f32
    %283 = vector.broadcast %cst_66 : f32 to vector<1x256xf32>
    %284 = arith.addf %282, %283 : vector<1x256xf32>
    %cst_67 = arith.constant 1.000000e+00 : f32
    %285 = vector.broadcast %cst_67 : f32 to vector<1x256xf32>
    %286 = arith.divf %285, %284 : vector<1x256xf32>
    %287 = vector.broadcast %286 : vector<1x256xf32> to vector<8x256xf32>
    %288 = arith.mulf %12, %287 : vector<8x256xf32>
    %289 = arith.cmpf one, %288, %288 : vector<8x256xf32>
    %cst_68 = arith.constant 0.000000e+00 : f32
    %290 = vector.broadcast %cst_68 : f32 to vector<8x256xf32>
    %291 = arith.select %289, %290, %288 : vector<8x256xi1>, vector<8x256xf32>
    %c0_69 = arith.constant 0 : index
    %c0_70 = arith.constant 0 : index
    %292 = vector.load %arg5[%c0_69, %c0_70] : memref<64x256xf32, #tpu.memory_space<vmem>>, vector<8x256xf32>
    tpu.vector_store %arg5[%c0_69, %c0_70], %291 {strides = array<i32>} : memref<64x256xf32, #tpu.memory_space<vmem>>, vector<8x256xf32>,
    %293 = arith.mulf %38, %38 : vector<8x256xf32>
    %cst_71 = arith.constant dense<0.000000e+00> : vector<256xf32>
    %294 = vector.multi_reduction <add>, %293, %cst_71 [0] : vector<8x256xf32> to vector<256xf32>
    %295 = vector.shape_cast %294 : vector<256xf32> to vector<1x256xf32>
    %296 = math.sqrt %295 : vector<1x256xf32>
    %cst_72 = arith.constant 9.99999993E-9 : f32
    %297 = vector.broadcast %cst_72 : f32 to vector<1x256xf32>
    %298 = arith.addf %296, %297 : vector<1x256xf32>
    %cst_73 = arith.constant 1.000000e+00 : f32
    %299 = vector.broadcast %cst_73 : f32 to vector<1x256xf32>
    %300 = arith.divf %299, %298 : vector<1x256xf32>
    %301 = vector.broadcast %300 : vector<1x256xf32> to vector<8x256xf32>
    %302 = arith.mulf %38, %301 : vector<8x256xf32>
    %303 = arith.cmpf one, %302, %302 : vector<8x256xf32>
    %cst_74 = arith.constant 0.000000e+00 : f32
    %304 = vector.broadcast %cst_74 : f32 to vector<8x256xf32>
    %305 = arith.select %303, %304, %302 : vector<8x256xi1>, vector<8x256xf32>
    %c8 = arith.constant 8 : index
    %c0_75 = arith.constant 0 : index
    %306 = vector.load %arg5[%c8, %c0_75] : memref<64x256xf32, #tpu.memory_space<vmem>>, vector<8x256xf32>
    tpu.vector_store %arg5[%c8, %c0_75], %305 {strides = array<i32>} : memref<64x256xf32, #tpu.memory_space<vmem>>, vector<8x256xf32>,
    %307 = arith.mulf %93, %93 : vector<8x256xf32>
    %cst_76 = arith.constant dense<0.000000e+00> : vector<256xf32>
    %308 = vector.multi_reduction <add>, %307, %cst_76 [0] : vector<8x256xf32> to vector<256xf32>
    %309 = vector.shape_cast %308 : vector<256xf32> to vector<1x256xf32>
    %310 = math.sqrt %309 : vector<1x256xf32>
    %cst_77 = arith.constant 9.99999993E-9 : f32
    %311 = vector.broadcast %cst_77 : f32 to vector<1x256xf32>
    %312 = arith.addf %310, %311 : vector<1x256xf32>
    %cst_78 = arith.constant 1.000000e+00 : f32
    %313 = vector.broadcast %cst_78 : f32 to vector<1x256xf32>
    %314 = arith.divf %313, %312 : vector<1x256xf32>
    %315 = vector.broadcast %314 : vector<1x256xf32> to vector<8x256xf32>
    %316 = arith.mulf %93, %315 : vector<8x256xf32>
    %317 = arith.cmpf one, %316, %316 : vector<8x256xf32>
    %cst_79 = arith.constant 0.000000e+00 : f32
    %318 = vector.broadcast %cst_79 : f32 to vector<8x256xf32>
    %319 = arith.select %317, %318, %316 : vector<8x256xi1>, vector<8x256xf32>
    %c16 = arith.constant 16 : index
    %c0_80 = arith.constant 0 : index
    %320 = vector.load %arg5[%c16, %c0_80] : memref<64x256xf32, #tpu.memory_space<vmem>>, vector<8x256xf32>
    tpu.vector_store %arg5[%c16, %c0_80], %319 {strides = array<i32>} : memref<64x256xf32, #tpu.memory_space<vmem>>, vector<8x256xf32>,
    %321 = arith.mulf %142, %142 : vector<8x256xf32>
    %cst_81 = arith.constant dense<0.000000e+00> : vector<256xf32>
    %322 = vector.multi_reduction <add>, %321, %cst_81 [0] : vector<8x256xf32> to vector<256xf32>
    %323 = vector.shape_cast %322 : vector<256xf32> to vector<1x256xf32>
    %324 = math.sqrt %323 : vector<1x256xf32>
    %cst_82 = arith.constant 9.99999993E-9 : f32
    %325 = vector.broadcast %cst_82 : f32 to vector<1x256xf32>
    %326 = arith.addf %324, %325 : vector<1x256xf32>
    %cst_83 = arith.constant 1.000000e+00 : f32
    %327 = vector.broadcast %cst_83 : f32 to vector<1x256xf32>
    %328 = arith.divf %327, %326 : vector<1x256xf32>
    %329 = vector.broadcast %328 : vector<1x256xf32> to vector<8x256xf32>
    %330 = arith.mulf %142, %329 : vector<8x256xf32>
    %331 = arith.cmpf one, %330, %330 : vector<8x256xf32>
    %cst_84 = arith.constant 0.000000e+00 : f32
    %332 = vector.broadcast %cst_84 : f32 to vector<8x256xf32>
    %333 = arith.select %331, %332, %330 : vector<8x256xi1>, vector<8x256xf32>
    %c24 = arith.constant 24 : index
    %c0_85 = arith.constant 0 : index
    %334 = vector.load %arg5[%c24, %c0_85] : memref<64x256xf32, #tpu.memory_space<vmem>>, vector<8x256xf32>
    tpu.vector_store %arg5[%c24, %c0_85], %333 {strides = array<i32>} : memref<64x256xf32, #tpu.memory_space<vmem>>, vector<8x256xf32>,
    %335 = arith.mulf %185, %185 : vector<8x256xf32>
    %cst_86 = arith.constant dense<0.000000e+00> : vector<256xf32>
    %336 = vector.multi_reduction <add>, %335, %cst_86 [0] : vector<8x256xf32> to vector<256xf32>
    %337 = vector.shape_cast %336 : vector<256xf32> to vector<1x256xf32>
    %338 = math.sqrt %337 : vector<1x256xf32>
    %cst_87 = arith.constant 9.99999993E-9 : f32
    %339 = vector.broadcast %cst_87 : f32 to vector<1x256xf32>
    %340 = arith.addf %338, %339 : vector<1x256xf32>
    %cst_88 = arith.constant 1.000000e+00 : f32
    %341 = vector.broadcast %cst_88 : f32 to vector<1x256xf32>
    %342 = arith.divf %341, %340 : vector<1x256xf32>
    %343 = vector.broadcast %342 : vector<1x256xf32> to vector<8x256xf32>
    %344 = arith.mulf %185, %343 : vector<8x256xf32>
    %345 = arith.cmpf one, %344, %344 : vector<8x256xf32>
    %cst_89 = arith.constant 0.000000e+00 : f32
    %346 = vector.broadcast %cst_89 : f32 to vector<8x256xf32>
    %347 = arith.select %345, %346, %344 : vector<8x256xi1>, vector<8x256xf32>
    %c32 = arith.constant 32 : index
    %c0_90 = arith.constant 0 : index
    %348 = vector.load %arg5[%c32, %c0_90] : memref<64x256xf32, #tpu.memory_space<vmem>>, vector<8x256xf32>
    tpu.vector_store %arg5[%c32, %c0_90], %347 {strides = array<i32>} : memref<64x256xf32, #tpu.memory_space<vmem>>, vector<8x256xf32>,
    %349 = arith.mulf %222, %222 : vector<8x256xf32>
    %cst_91 = arith.constant dense<0.000000e+00> : vector<256xf32>
    %350 = vector.multi_reduction <add>, %349, %cst_91 [0] : vector<8x256xf32> to vector<256xf32>
    %351 = vector.shape_cast %350 : vector<256xf32> to vector<1x256xf32>
    %352 = math.sqrt %351 : vector<1x256xf32>
    %cst_92 = arith.constant 9.99999993E-9 : f32
    %353 = vector.broadcast %cst_92 : f32 to vector<1x256xf32>
    %354 = arith.addf %352, %353 : vector<1x256xf32>
    %cst_93 = arith.constant 1.000000e+00 : f32
    %355 = vector.broadcast %cst_93 : f32 to vector<1x256xf32>
    %356 = arith.divf %355, %354 : vector<1x256xf32>
    %357 = vector.broadcast %356 : vector<1x256xf32> to vector<8x256xf32>
    %358 = arith.mulf %222, %357 : vector<8x256xf32>
    %359 = arith.cmpf one, %358, %358 : vector<8x256xf32>
    %cst_94 = arith.constant 0.000000e+00 : f32
    %360 = vector.broadcast %cst_94 : f32 to vector<8x256xf32>
    %361 = arith.select %359, %360, %358 : vector<8x256xi1>, vector<8x256xf32>
    %c40 = arith.constant 40 : index
    %c0_95 = arith.constant 0 : index
    %362 = vector.load %arg5[%c40, %c0_95] : memref<64x256xf32, #tpu.memory_space<vmem>>, vector<8x256xf32>
    tpu.vector_store %arg5[%c40, %c0_95], %361 {strides = array<i32>} : memref<64x256xf32, #tpu.memory_space<vmem>>, vector<8x256xf32>,
    %363 = arith.mulf %253, %253 : vector<8x256xf32>
    %cst_96 = arith.constant dense<0.000000e+00> : vector<256xf32>
    %364 = vector.multi_reduction <add>, %363, %cst_96 [0] : vector<8x256xf32> to vector<256xf32>
    %365 = vector.shape_cast %364 : vector<256xf32> to vector<1x256xf32>
    %366 = math.sqrt %365 : vector<1x256xf32>
    %cst_97 = arith.constant 9.99999993E-9 : f32
    %367 = vector.broadcast %cst_97 : f32 to vector<1x256xf32>
    %368 = arith.addf %366, %367 : vector<1x256xf32>
    %cst_98 = arith.constant 1.000000e+00 : f32
    %369 = vector.broadcast %cst_98 : f32 to vector<1x256xf32>
    %370 = arith.divf %369, %368 : vector<1x256xf32>
    %371 = vector.broadcast %370 : vector<1x256xf32> to vector<8x256xf32>
    %372 = arith.mulf %253, %371 : vector<8x256xf32>
    %373 = arith.cmpf one, %372, %372 : vector<8x256xf32>
    %cst_99 = arith.constant 0.000000e+00 : f32
    %374 = vector.broadcast %cst_99 : f32 to vector<8x256xf32>
    %375 = arith.select %373, %374, %372 : vector<8x256xi1>, vector<8x256xf32>
    %c48 = arith.constant 48 : index
    %c0_100 = arith.constant 0 : index
    %376 = vector.load %arg5[%c48, %c0_100] : memref<64x256xf32, #tpu.memory_space<vmem>>, vector<8x256xf32>
    tpu.vector_store %arg5[%c48, %c0_100], %375 {strides = array<i32>} : memref<64x256xf32, #tpu.memory_space<vmem>>, vector<8x256xf32>,
    %377 = arith.mulf %278, %278 : vector<8x256xf32>
    %cst_101 = arith.constant dense<0.000000e+00> : vector<256xf32>
    %378 = vector.multi_reduction <add>, %377, %cst_101 [0] : vector<8x256xf32> to vector<256xf32>
    %379 = vector.shape_cast %378 : vector<256xf32> to vector<1x256xf32>
    %380 = math.sqrt %379 : vector<1x256xf32>
    %cst_102 = arith.constant 9.99999993E-9 : f32
    %381 = vector.broadcast %cst_102 : f32 to vector<1x256xf32>
    %382 = arith.addf %380, %381 : vector<1x256xf32>
    %cst_103 = arith.constant 1.000000e+00 : f32
    %383 = vector.broadcast %cst_103 : f32 to vector<1x256xf32>
    %384 = arith.divf %383, %382 : vector<1x256xf32>
    %385 = vector.broadcast %384 : vector<1x256xf32> to vector<8x256xf32>
    %386 = arith.mulf %278, %385 : vector<8x256xf32>
    %387 = arith.cmpf one, %386, %386 : vector<8x256xf32>
    %cst_104 = arith.constant 0.000000e+00 : f32
    %388 = vector.broadcast %cst_104 : f32 to vector<8x256xf32>
    %389 = arith.select %387, %388, %386 : vector<8x256xi1>, vector<8x256xf32>
    %c56 = arith.constant 56 : index
    %c0_105 = arith.constant 0 : index
    %390 = vector.load %arg5[%c56, %c0_105] : memref<64x256xf32, #tpu.memory_space<vmem>>, vector<8x256xf32>
    tpu.vector_store %arg5[%c56, %c0_105], %389 {strides = array<i32>} : memref<64x256xf32, #tpu.memory_space<vmem>>, vector<8x256xf32>,
    return
  }
  func.func @transform_0(%arg0: i32) -> (i32, i32) {
    %c0_i32 = arith.constant 0 : i32
    %c0_i32_0 = arith.constant 0 : i32
    return %c0_i32, %arg0 : i32, i32
  }
  func.func @transform_1(%arg0: i32) -> (i32, i32) {
    %c0_i32 = arith.constant 0 : i32
    %c0_i32_0 = arith.constant 0 : i32
    %c0_i32_1 = arith.constant 0 : i32
    return %c0_i32, %c0_i32_0 : i32, i32
  }
  func.func @transform_2(%arg0: i32) -> (i32, i32) {
    %c0_i32 = arith.constant 0 : i32
    %c0_i32_0 = arith.constant 0 : i32
    %c0_i32_1 = arith.constant 0 : i32
    return %c0_i32, %c0_i32_0 : i32, i32
  }
  func.func @transform_3(%arg0: i32) -> (i32, i32) {
    %c0_i32 = arith.constant 0 : i32
    %c0_i32_0 = arith.constant 0 : i32
    %c0_i32_1 = arith.constant 0 : i32
    return %c0_i32, %c0_i32_0 : i32, i32
  }
  func.func @transform_4(%arg0: i32) -> (i32, i32) {
    %c0_i32 = arith.constant 0 : i32
    %c0_i32_0 = arith.constant 0 : i32
    return %c0_i32, %arg0 : i32, i32
  }
}

</mosaic_0001>

<llo_original>
// kernel: tpu_custom_call.1
$region0: #{tpu_custom_call.1}
  #allocation0 [shape = 'u32[]', space=smem, size = 0x4, offset = 0x4, fixed_abs, tag = 'smem constant byte address 0x4 - core index']
  #allocation1 [shape = 'u32[72,128]{1,0:T(1,128)}', space=vmem, size = 0x9000, scoped, tag = 'internal scratch']
  %s0 = inlined_call_operand.vmem [shape: f32[24,256], index: 0, kind: input, shape index: {}]
  %s1 = inlined_call_operand.vmem [shape: f32[32,24], index: 1, kind: input, shape index: {}]
  %s2 = inlined_call_operand.vmem [shape: f32[32,1], index: 2, kind: input, shape index: {}]
  %s3 = inlined_call_operand.vmem [shape: f32[64,32], index: 3, kind: input, shape index: {}]
  %s4 = inlined_call_operand.hbm [shape: f32[64,256], index: 4, kind: output, shape index: {}]
  %s5 = sld [smem:[#allocation0]]
  $region26: #{tpu_custom_call.1} parent=0
    _
  %s7 = ssub.s32 1, %s5
  %s8 = scalar_select 0, %s7, %s5
  $region1: #{tpu_custom_call.1} parent=0
    #allocation2 [shape = 'u8[65536]{0}', space=vmem, size = 0x10000, scoped, tag = 'output window, operand 0, single buffered']
    #allocation3 [shape = 's32[1]{0}', space=sflag, size = 0x4, scoped, tag = 'scoped memory for tpu_custom_call.1']
    %9 = vsyncpa [#allocation3], 0
    // Predicated region
    $region2: #{tpu_custom_call.1} parent=1 // pred_check
      _
    $region3: #{tpu_custom_call.1} parent=1 // pred_check_branch
      %11 = sbr.rel (0) target = $region5
    $region4: #{tpu_custom_call.1} parent=1 // pred_region
      _
    $region5: #{tpu_custom_call.1} parent=1 // pred_fallthru
      _
    // Predicated region
    $region6: #{tpu_custom_call.1} parent=1 // pred_check
      _
    $region7: #{tpu_custom_call.1} parent=1 // pred_check_branch
      %13 = sbr.rel (0) target = $region9
    $region8: #{tpu_custom_call.1} parent=1 // pred_region
      _
    $region9: #{tpu_custom_call.1} parent=1 // pred_fallthru
      _
    // Predicated region
    $region10: #{tpu_custom_call.1} parent=1 // pred_check
      _
    $region11: #{tpu_custom_call.1} parent=1 // pred_check_branch
      %15 = sbr.rel (0) target = $region13
    $region12: #{tpu_custom_call.1} parent=1 // pred_region
      _
    $region13: #{tpu_custom_call.1} parent=1 // pred_fallthru
      _
    // Predicated region
    $region14: #{tpu_custom_call.1} parent=1 // pred_check
      _
    $region15: #{tpu_custom_call.1} parent=1 // pred_check_branch
      %17 = sbr.rel (0) target = $region17
    $region16: #{tpu_custom_call.1} parent=1 // pred_region
      _
    $region17: #{tpu_custom_call.1} parent=1 // pred_fallthru
      _
    %v18 = vld [vmem:[%s1] sm:$0xff]
    %v19 = vld [vmem:[%s1 + $0x8] sm:$0xff]
    %v20 = vld [vmem:[%s1 + $0x10] sm:$0xff]
    %v21 = vld [vmem:[%s1 + $0x18] sm:$0xff]
    %v22 = vld [vmem:[%s0] sm:$0xff]
    %v23 = vld [vmem:[%s0 + $0x8] sm:$0xff]
    %v24 = vld [vmem:[%s0 + $0x10] sm:$0xff]
    %v25 = vld [vmem:[%s0 + $0x18] sm:$0xff]
    %v26 = vld [vmem:[%s0 + $0x20] sm:$0xff]
    %v27 = vld [vmem:[%s0 + $0x28] sm:$0xff]
    %v28 = vld [vmem:[%s2] sm:$0xff]
    %v29 = vld [vmem:[%s2 + $0x8] sm:$0xff]
    %v30 = vld [vmem:[%s2 + $0x10] sm:$0xff]
    %v31 = vld [vmem:[%s2 + $0x18] sm:$0xff]
    %33 = vset.pattern.permute.xlu0 0
    %34 = vperm.xlu0 %33, %v28
    %v35 = vpop.permute.xlu0 %34
    %38 = vset.pattern.permute.xlu0 0
    %39 = vperm.xlu0 %38, %v29
    %v40 = vpop.permute.xlu0 %39
    %43 = vset.pattern.permute.xlu0 0
    %44 = vperm.xlu0 %43, %v30
    %v45 = vpop.permute.xlu0 %44
    %48 = vset.pattern.permute.xlu0 0
    %49 = vperm.xlu0 %48, %v31
    %v50 = vpop.permute.xlu0 %49
    %vm52 = vcmask 195584
    %v54 = vsel %vm52, %v18, 0
    %v57 = vsel %vm52, %v19, 0
    %v60 = vsel %vm52, %v20, 0
    %v63 = vsel %vm52, %v21, 0
    %65 = vmatpush.msra.mxu0 0.0
    %66 = vmatpush.msra.mxu0 0.0
    %67 = vmatpush.msra.mxu0 0.0
    %68 = vmatpush.msra.mxu0 0.0
    %69 = vmatpush.msra.mxu0 0.0
    %70 = vmatpush.msra.mxu0 0.0
    %71 = vmatpush.msra.mxu0 0.0
    %72 = vmatpush.msra.mxu0 0.0
    %73 = vmatpush.msra.mxu0 0.0
    %74 = vmatpush.msra.mxu0 0.0
    %75 = vmatpush.msra.mxu0 0.0
    %76 = vmatpush.msra.mxu0 0.0
    %77 = vmatpush.msra.mxu0 0.0
    %78 = vmatpush.msra.mxu0 %v26
    %79 = vmatpush.msra.mxu0 %v24
    %80 = vmatpush.msra.mxu0 %v22
    %81 = vmatmul.f32.gmra.mxu0 %v54
    %v82 = vpop.f32.mrf.mxu0
    %v83 = vadd.f32 %v35, %v82
    %84 = vmatmul.f32.gmra.mxu0 %v57
    %v85 = vpop.f32.mrf.mxu0
    %v86 = vadd.f32 %v40, %v85
    %87 = vmatmul.f32.gmra.mxu0 %v60
    %v88 = vpop.f32.mrf.mxu0
    %v89 = vadd.f32 %v45, %v88
    %90 = vmatmul.f32.gmra.mxu0 %v63
    %v91 = vpop.f32.mrf.mxu0
    %v92 = vadd.f32 %v50, %v91
    %93 = vdwg.mxu0
    %94 = vmatpush.msra.mxu0 0.0
    %95 = vmatpush.msra.mxu0 0.0
    %96 = vmatpush.msra.mxu0 0.0
    %97 = vmatpush.msra.mxu0 0.0
    %98 = vmatpush.msra.mxu0 0.0
    %99 = vmatpush.msra.mxu0 0.0
    %100 = vmatpush.msra.mxu0 0.0
    %101 = vmatpush.msra.mxu0 0.0
    %102 = vmatpush.msra.mxu0 0.0
    %103 = vmatpush.msra.mxu0 0.0
    %104 = vmatpush.msra.mxu0 0.0
    %105 = vmatpush.msra.mxu0 0.0
    %106 = vmatpush.msra.mxu0 0.0
    %107 = vmatpush.msra.mxu0 %v27
    %108 = vmatpush.msra.mxu0 %v25
    %109 = vmatpush.msra.mxu0 %v23
    %110 = vmatmul.f32.gmra.mxu0 %v54
    %v111 = vpop.f32.mrf.mxu0
    %v112 = vadd.f32 %v35, %v111
    %113 = vmatmul.f32.gmra.mxu0 %v57
    %v114 = vpop.f32.mrf.mxu0
    %v115 = vadd.f32 %v40, %v114
    %116 = vmatmul.f32.gmra.mxu0 %v60
    %v117 = vpop.f32.mrf.mxu0
    %v118 = vadd.f32 %v45, %v117
    %119 = vmatmul.f32.gmra.mxu0 %v63
    %v120 = vpop.f32.mrf.mxu0
    %v121 = vadd.f32 %v50, %v120
    %122 = vdwg.mxu0
    %v123 = vtanh.pop %v83
    %v124 = vtanh.pop %v112
    %v125 = vtanh.pop %v86
    %v126 = vtanh.pop %v115
    %v127 = vtanh.pop %v89
    %v128 = vtanh.pop %v118
    %v129 = vtanh.pop %v92
    %v130 = vtanh.pop %v121
    %v131 = vmul.f32 %v123, %v123
    %v132 = vmul.f32 %v124, %v124
    %v133 = vmul.f32 %v125, %v125
    %v134 = vmul.f32 %v126, %v126
    %v135 = vmul.f32 %v127, %v127
    %v136 = vmul.f32 %v128, %v128
    %v137 = vmul.f32 %v129, %v129
    %v138 = vmul.f32 %v130, %v130
    %v139 = vsub.f32 1.0, %v131
    %v140 = vsub.f32 1.0, %v132
    %v141 = vsub.f32 1.0, %v133
    %v142 = vsub.f32 1.0, %v134
    %v143 = vsub.f32 1.0, %v135
    %v144 = vsub.f32 1.0, %v136
    %v145 = vsub.f32 1.0, %v137
    %v146 = vsub.f32 1.0, %v138
    %v147 = vld [vmem:[%s3] sm:$0xff]
    %v148 = vld [vmem:[%s3 + $0x8] sm:$0xff]
    %v149 = vld [vmem:[%s3 + $0x10] sm:$0xff]
    %v150 = vld [vmem:[%s3 + $0x18] sm:$0xff]
    %v151 = vld [vmem:[%s3 + $0x20] sm:$0xff]
    %v152 = vld [vmem:[%s3 + $0x28] sm:$0xff]
    %v153 = vld [vmem:[%s3 + $0x30] sm:$0xff]
    %v154 = vld [vmem:[%s3 + $0x38] sm:$0xff]
    %vm155 = vcmask 261120
    %v157 = vsel %vm155, %v147, 0
    %v160 = vsel %vm155, %v148, 0
    %v163 = vsel %vm155, %v149, 0
    %v166 = vsel %vm155, %v150, 0
    %v169 = vsel %vm155, %v151, 0
    %v172 = vsel %vm155, %v152, 0
    %v175 = vsel %vm155, %v153, 0
    %v178 = vsel %vm155, %v154, 0
    %180 = vmatpush.msra.mxu0 0.0
    %181 = vmatpush.msra.mxu0 0.0
    %182 = vmatpush.msra.mxu0 0.0
    %183 = vmatpush.msra.mxu0 0.0
    %184 = vmatpush.msra.mxu0 0.0
    %185 = vmatpush.msra.mxu0 0.0
    %186 = vmatpush.msra.mxu0 0.0
    %187 = vmatpush.msra.mxu0 0.0
    %188 = vmatpush.msra.mxu0 0.0
    %189 = vmatpush.msra.mxu0 0.0
    %190 = vmatpush.msra.mxu0 0.0
    %191 = vmatpush.msra.mxu0 0.0
    %192 = vmatpush.msra.mxu0 %v145
    %193 = vmatpush.msra.mxu0 %v143
    %194 = vmatpush.msra.mxu0 %v141
    %195 = vmatpush.msra.mxu0 %v139
    %196 = vmatmul.f32.gmra.mxu0 %v157
    %v197 = vpop.f32.mrf.mxu0
    %v198 = vadd.f32 0.0, %v197
    %199 = vmatmul.f32.gmra.mxu0 %v160
    %v200 = vpop.f32.mrf.mxu0
    %v201 = vadd.f32 0.0, %v200
    %202 = vmatmul.f32.gmra.mxu0 %v163
    %v203 = vpop.f32.mrf.mxu0
    %v204 = vadd.f32 0.0, %v203
    %205 = vmatmul.f32.gmra.mxu0 %v166
    %v206 = vpop.f32.mrf.mxu0
    %v207 = vadd.f32 0.0, %v206
    %208 = vmatmul.f32.gmra.mxu0 %v169
    %v209 = vpop.f32.mrf.mxu0
    %v210 = vadd.f32 0.0, %v209
    %211 = vmatmul.f32.gmra.mxu0 %v172
    %v212 = vpop.f32.mrf.mxu0
    %v213 = vadd.f32 0.0, %v212
    %214 = vmatmul.f32.gmra.mxu0 %v175
    %v215 = vpop.f32.mrf.mxu0
    %v216 = vadd.f32 0.0, %v215
    %217 = vmatmul.f32.gmra.mxu0 %v178
    %v218 = vpop.f32.mrf.mxu0
    %v219 = vadd.f32 0.0, %v218
    %220 = vdwg.mxu0
    %221 = vmatpush.msra.mxu0 0.0
    %222 = vmatpush.msra.mxu0 0.0
    %223 = vmatpush.msra.mxu0 0.0
    %224 = vmatpush.msra.mxu0 0.0
    %225 = vmatpush.msra.mxu0 0.0
    %226 = vmatpush.msra.mxu0 0.0
    %227 = vmatpush.msra.mxu0 0.0
    %228 = vmatpush.msra.mxu0 0.0
    %229 = vmatpush.msra.mxu0 0.0
    %230 = vmatpush.msra.mxu0 0.0
    %231 = vmatpush.msra.mxu0 0.0
    %232 = vmatpush.msra.mxu0 0.0
    %233 = vmatpush.msra.mxu0 %v146
    %234 = vmatpush.msra.mxu0 %v144
    %235 = vmatpush.msra.mxu0 %v142
    %236 = vmatpush.msra.mxu0 %v140
    %237 = vmatmul.f32.gmra.mxu0 %v157
    %v238 = vpop.f32.mrf.mxu0
    %v239 = vadd.f32 0.0, %v238
    %240 = vmatmul.f32.gmra.mxu0 %v160
    %v241 = vpop.f32.mrf.mxu0
    %v242 = vadd.f32 0.0, %v241
    %243 = vmatmul.f32.gmra.mxu0 %v163
    %v244 = vpop.f32.mrf.mxu0
    %v245 = vadd.f32 0.0, %v244
    %246 = vmatmul.f32.gmra.mxu0 %v166
    %v247 = vpop.f32.mrf.mxu0
    %v248 = vadd.f32 0.0, %v247
    %249 = vmatmul.f32.gmra.mxu0 %v169
    %v250 = vpop.f32.mrf.mxu0
    %v251 = vadd.f32 0.0, %v250
    %252 = vmatmul.f32.gmra.mxu0 %v172
    %v253 = vpop.f32.mrf.mxu0
    %v254 = vadd.f32 0.0, %v253
    %255 = vmatmul.f32.gmra.mxu0 %v175
    %v256 = vpop.f32.mrf.mxu0
    %v257 = vadd.f32 0.0, %v256
    %258 = vmatmul.f32.gmra.mxu0 %v178
    %v259 = vpop.f32.mrf.mxu0
    %v260 = vadd.f32 0.0, %v259
    %261 = vdwg.mxu0
    %v262 = vmul.f32 %v198, %v198
    %v263 = vmul.f32 %v239, %v239
    %v264 = vrot.slane %v262, 4
    %v265 = vadd.f32 %v262, %v264
    %v266 = vrot.slane %v265, 2
    %v267 = vadd.f32 %v265, %v266
    %v268 = vrot.slane %v267, 1
    %v269 = vadd.f32 %v267, %v268
    %v270 = vrot.slane %v263, 4
    %v271 = vadd.f32 %v263, %v270
    %v272 = vrot.slane %v271, 2
    %v273 = vadd.f32 %v271, %v272
    %v274 = vrot.slane %v273, 1
    %v275 = vadd.f32 %v273, %v274
    %v276 = vrsqrt.pop %v269
    %v277 = vmul.f32 %v276, %v269
    %v278 = vmul.f32 %v277, %v276
    %v279 = vmul.f32 0.5, %v278
    %v280 = vsub.f32 1.5, %v279
    %v281 = vmul.f32 %v276, %v280
    %v282 = vmul.f32 %v269, %v281
    %vm283 = vcmp.eq.f32.partialorder %v269, inf
    %v284 = vsel %vm283, %v269, %v282
    %vm285 = vcmp.eq.f32.partialorder %v269, 0.0
    %v286 = vand.u32 %v269, 2147483648
    %v287 = vsel %vm285, %v286, %v284
    %v288 = vrsqrt.pop %v275
    %v289 = vmul.f32 %v288, %v275
    %v290 = vmul.f32 %v289, %v288
    %v291 = vmul.f32 0.5, %v290
    %v292 = vsub.f32 1.5, %v291
    %v293 = vmul.f32 %v288, %v292
    %v294 = vmul.f32 %v275, %v293
    %vm295 = vcmp.eq.f32.partialorder %v275, inf
    %v296 = vsel %vm295, %v275, %v294
    %vm297 = vcmp.eq.f32.partialorder %v275, 0.0
    %v298 = vand.u32 %v275, 2147483648
    %v299 = vsel %vm297, %v298, %v296
    %v300 = vadd.f32 %v287, 1e-08
    %v301 = vadd.f32 %v299, 1e-08
    %v302 = vrcp.pop %v300
    %v303 = vmul.f32 %v300, %v302
    %v304 = vsub.f32 1.0, %v303
    %v305 = vmul.f32 %v302, %v304
    %v306 = vadd.f32 %v302, %v305
    %vm307 = vweird.f32 %v300
    %vm308 = vweird.f32 %v302
    %vm309 = vmor %vm307, %vm308
    %v310 = vsel %vm309, %v302, %v306
    %v311 = vand.u32 2147483647, %v300
    %vm312 = vcmp.eq.f32.partialorder %v311, 8.507059e+37
    %v313 = vand.u32 %v300, 2147483648
    %v314 = vor.u32 1.1754944e-38, %v313
    %v315 = vsel %vm312, %v314, %v310
    %v316 = vmul.f32 1.0, %v315
    %v317 = vrcp.pop %v301
    %v318 = vmul.f32 %v301, %v317
    %v319 = vsub.f32 1.0, %v318
    %v320 = vmul.f32 %v317, %v319
    %v321 = vadd.f32 %v317, %v320
    %vm322 = vweird.f32 %v301
    %vm323 = vweird.f32 %v317
    %vm324 = vmor %vm322, %vm323
    %v325 = vsel %vm324, %v317, %v321
    %v326 = vand.u32 2147483647, %v301
    %vm327 = vcmp.eq.f32.partialorder %v326, 8.507059e+37
    %v328 = vand.u32 %v301, 2147483648
    %v329 = vor.u32 1.1754944e-38, %v328
    %v330 = vsel %vm327, %v329, %v325
    %v331 = vmul.f32 1.0, %v330
    %v332 = vmul.f32 %v198, %v316
    %v333 = vmul.f32 %v239, %v331
    %vm334 = vcmp.ne.f32.partialorder %v332, %v332
    %vm335 = vcmp.ne.f32.partialorder %v333, %v333
    %v336 = vsel %vm334, 0.0, %v332
    %v337 = vsel %vm335, 0.0, %v333
    %v338 = vmul.f32 %v336, %v201
    %v339 = vmul.f32 %v337, %v242
    %v340 = vrot.slane %v338, 4
    %v341 = vadd.f32 %v338, %v340
    %v342 = vrot.slane %v341, 2
    %v343 = vadd.f32 %v341, %v342
    %v344 = vrot.slane %v343, 1
    %v345 = vadd.f32 %v343, %v344
    %v346 = vrot.slane %v339, 4
    %v347 = vadd.f32 %v339, %v346
    %v348 = vrot.slane %v347, 2
    %v349 = vadd.f32 %v347, %v348
    %v350 = vrot.slane %v349, 1
    %v351 = vadd.f32 %v349, %v350
    %v352 = vmul.f32 %v336, %v345
    %v353 = vmul.f32 %v337, %v351
    %v354 = vsub.f32 %v201, %v352
    %v355 = vsub.f32 %v242, %v353
    %v356 = vmul.f32 %v336, %v204
    %v357 = vmul.f32 %v337, %v245
    %v358 = vrot.slane %v356, 4
    %v359 = vadd.f32 %v356, %v358
    %v360 = vrot.slane %v359, 2
    %v361 = vadd.f32 %v359, %v360
    %v362 = vrot.slane %v361, 1
    %v363 = vadd.f32 %v361, %v362
    %v364 = vrot.slane %v357, 4
    %v365 = vadd.f32 %v357, %v364
    %v366 = vrot.slane %v365, 2
    %v367 = vadd.f32 %v365, %v366
    %v368 = vrot.slane %v367, 1
    %v369 = vadd.f32 %v367, %v368
    %v370 = vmul.f32 %v336, %v363
    %v371 = vmul.f32 %v337, %v369
    %v372 = vsub.f32 %v204, %v370
    %v373 = vsub.f32 %v245, %v371
    %v374 = vmul.f32 %v336, %v207
    %v375 = vmul.f32 %v337, %v248
    %v376 = vrot.slane %v374, 4
    %v377 = vadd.f32 %v374, %v376
    %v378 = vrot.slane %v377, 2
    %v379 = vadd.f32 %v377, %v378
    %v380 = vrot.slane %v379, 1
    %v381 = vadd.f32 %v379, %v380
    %v382 = vrot.slane %v375, 4
    %v383 = vadd.f32 %v375, %v382
    %v384 = vrot.slane %v383, 2
    %v385 = vadd.f32 %v383, %v384
    %v386 = vrot.slane %v385, 1
    %v387 = vadd.f32 %v385, %v386
    %v388 = vmul.f32 %v336, %v381
    %v389 = vmul.f32 %v337, %v387
    %v390 = vsub.f32 %v207, %v388
    %v391 = vsub.f32 %v248, %v389
    %v392 = vmul.f32 %v336, %v210
    %v393 = vmul.f32 %v337, %v251
    %v394 = vrot.slane %v392, 4
    %v395 = vadd.f32 %v392, %v394
    %v396 = vrot.slane %v395, 2
    %v397 = vadd.f32 %v395, %v396
    %v398 = vrot.slane %v397, 1
    %v399 = vadd.f32 %v397, %v398
    %v400 = vrot.slane %v393, 4
    %v401 = vadd.f32 %v393, %v400
    %v402 = vrot.slane %v401, 2
    %v403 = vadd.f32 %v401, %v402
    %v404 = vrot.slane %v403, 1
    %v405 = vadd.f32 %v403, %v404
    %v406 = vmul.f32 %v336, %v399
    %v407 = vmul.f32 %v337, %v405
    %v408 = vsub.f32 %v210, %v406
    %v409 = vsub.f32 %v251, %v407
    %v410 = vmul.f32 %v336, %v213
    %v411 = vmul.f32 %v337, %v254
    %v412 = vrot.slane %v410, 4
    %v413 = vadd.f32 %v410, %v412
    %v414 = vrot.slane %v413, 2
    %v415 = vadd.f32 %v413, %v414
    %v416 = vrot.slane %v415, 1
    %v417 = vadd.f32 %v415, %v416
    %v418 = vrot.slane %v411, 4
    %v419 = vadd.f32 %v411, %v418
    %v420 = vrot.slane %v419, 2
    %v421 = vadd.f32 %v419, %v420
    %v422 = vrot.slane %v421, 1
    %v423 = vadd.f32 %v421, %v422
    %v424 = vmul.f32 %v336, %v417
    %v425 = vmul.f32 %v337, %v423
    %v426 = vsub.f32 %v213, %v424
    %v427 = vsub.f32 %v254, %v425
    %v428 = vmul.f32 %v336, %v216
    %v429 = vmul.f32 %v337, %v257
    %v430 = vrot.slane %v428, 4
    %v431 = vadd.f32 %v428, %v430
    %v432 = vrot.slane %v431, 2
    %v433 = vadd.f32 %v431, %v432
    %v434 = vrot.slane %v433, 1
    %v435 = vadd.f32 %v433, %v434
    %v436 = vrot.slane %v429, 4
    %v437 = vadd.f32 %v429, %v436
    %v438 = vrot.slane %v437, 2
    %v439 = vadd.f32 %v437, %v438
    %v440 = vrot.slane %v439, 1
    %v441 = vadd.f32 %v439, %v440
    %v442 = vmul.f32 %v336, %v435
    %v443 = vmul.f32 %v337, %v441
    %v444 = vsub.f32 %v216, %v442
    %v445 = vsub.f32 %v257, %v443
    %v446 = vmul.f32 %v336, %v219
    %v447 = vmul.f32 %v337, %v260
    %v448 = vrot.slane %v446, 4
    %v449 = vadd.f32 %v446, %v448
    %v450 = vrot.slane %v449, 2
    %v451 = vadd.f32 %v449, %v450
    %v452 = vrot.slane %v451, 1
    %v453 = vadd.f32 %v451, %v452
    %v454 = vrot.slane %v447, 4
    %v455 = vadd.f32 %v447, %v454
    %v456 = vrot.slane %v455, 2
    %v457 = vadd.f32 %v455, %v456
    %v458 = vrot.slane %v457, 1
    %v459 = vadd.f32 %v457, %v458
    %v460 = vmul.f32 %v336, %v453
    %v461 = vmul.f32 %v337, %v459
    %v462 = vsub.f32 %v219, %v460
    %v463 = vsub.f32 %v260, %v461
    %v464 = vmul.f32 %v354, %v354
    %v465 = vmul.f32 %v355, %v355
    %v466 = vrot.slane %v464, 4
    %v467 = vadd.f32 %v464, %v466
    %v468 = vrot.slane %v467, 2
    %v469 = vadd.f32 %v467, %v468
    %v470 = vrot.slane %v469, 1
    %v471 = vadd.f32 %v469, %v470
    %v472 = vrot.slane %v465, 4
    %v473 = vadd.f32 %v465, %v472
    %v474 = vrot.slane %v473, 2
    %v475 = vadd.f32 %v473, %v474
    %v476 = vrot.slane %v475, 1
    %v477 = vadd.f32 %v475, %v476
    %v478 = vrsqrt.pop %v471
    %v479 = vmul.f32 %v478, %v471
    %v480 = vmul.f32 %v479, %v478
    %v481 = vmul.f32 0.5, %v480
    %v482 = vsub.f32 1.5, %v481
    %v483 = vmul.f32 %v478, %v482
    %v484 = vmul.f32 %v471, %v483
    %vm485 = vcmp.eq.f32.partialorder %v471, inf
    %v486 = vsel %vm485, %v471, %v484
    %vm487 = vcmp.eq.f32.partialorder %v471, 0.0
    %v488 = vand.u32 %v471, 2147483648
    %v489 = vsel %vm487, %v488, %v486
    %v490 = vrsqrt.pop %v477
    %v491 = vmul.f32 %v490, %v477
    %v492 = vmul.f32 %v491, %v490
    %v493 = vmul.f32 0.5, %v492
    %v494 = vsub.f32 1.5, %v493
    %v495 = vmul.f32 %v490, %v494
    %v496 = vmul.f32 %v477, %v495
    %vm497 = vcmp.eq.f32.partialorder %v477, inf
    %v498 = vsel %vm497, %v477, %v496
    %vm499 = vcmp.eq.f32.partialorder %v477, 0.0
    %v500 = vand.u32 %v477, 2147483648
    %v501 = vsel %vm499, %v500, %v498
    %v502 = vadd.f32 %v489, 1e-08
    %v503 = vadd.f32 %v501, 1e-08
    %v504 = vrcp.pop %v502
    %v505 = vmul.f32 %v502, %v504
    %v506 = vsub.f32 1.0, %v505
    %v507 = vmul.f32 %v504, %v506
    %v508 = vadd.f32 %v504, %v507
    %vm509 = vweird.f32 %v502
    %vm510 = vweird.f32 %v504
    %vm511 = vmor %vm509, %vm510
    %v512 = vsel %vm511, %v504, %v508
    %v513 = vand.u32 2147483647, %v502
    %vm514 = vcmp.eq.f32.partialorder %v513, 8.507059e+37
    %v515 = vand.u32 %v502, 2147483648
    %v516 = vor.u32 1.1754944e-38, %v515
    %v517 = vsel %vm514, %v516, %v512
    %v518 = vmul.f32 1.0, %v517
    %v519 = vrcp.pop %v503
    %v520 = vmul.f32 %v503, %v519
    %v521 = vsub.f32 1.0, %v520
    %v522 = vmul.f32 %v519, %v521
    %v523 = vadd.f32 %v519, %v522
    %vm524 = vweird.f32 %v503
    %vm525 = vweird.f32 %v519
    %vm526 = vmor %vm524, %vm525
    %v527 = vsel %vm526, %v519, %v523
    %v528 = vand.u32 2147483647, %v503
    %vm529 = vcmp.eq.f32.partialorder %v528, 8.507059e+37
    %v530 = vand.u32 %v503, 2147483648
    %v531 = vor.u32 1.1754944e-38, %v530
    %v532 = vsel %vm529, %v531, %v527
    %v533 = vmul.f32 1.0, %v532
    %v534 = vmul.f32 %v354, %v518
    %v535 = vmul.f32 %v355, %v533
    %vm536 = vcmp.ne.f32.partialorder %v534, %v534
    %vm537 = vcmp.ne.f32.partialorder %v535, %v535
    %v538 = vsel %vm536, 0.0, %v534
    %v539 = vsel %vm537, 0.0, %v535
    %v540 = vmul.f32 %v538, %v372
    %v541 = vmul.f32 %v539, %v373
    %v542 = vrot.slane %v540, 4
    %v543 = vadd.f32 %v540, %v542
    %v544 = vrot.slane %v543, 2
    %v545 = vadd.f32 %v543, %v544
    %v546 = vrot.slane %v545, 1
    %v547 = vadd.f32 %v545, %v546
    %v548 = vrot.slane %v541, 4
    %v549 = vadd.f32 %v541, %v548
    %v550 = vrot.slane %v549, 2
    %v551 = vadd.f32 %v549, %v550
    %v552 = vrot.slane %v551, 1
    %v553 = vadd.f32 %v551, %v552
    %v554 = vmul.f32 %v538, %v547
    %v555 = vmul.f32 %v539, %v553
    %v556 = vsub.f32 %v372, %v554
    %v557 = vsub.f32 %v373, %v555
    %v558 = vmul.f32 %v538, %v390
    %v559 = vmul.f32 %v539, %v391
    %v560 = vrot.slane %v558, 4
    %v561 = vadd.f32 %v558, %v560
    %v562 = vrot.slane %v561, 2
    %v563 = vadd.f32 %v561, %v562
    %v564 = vrot.slane %v563, 1
    %v565 = vadd.f32 %v563, %v564
    %v566 = vrot.slane %v559, 4
    %v567 = vadd.f32 %v559, %v566
    %v568 = vrot.slane %v567, 2
    %v569 = vadd.f32 %v567, %v568
    %v570 = vrot.slane %v569, 1
    %v571 = vadd.f32 %v569, %v570
    %v572 = vmul.f32 %v538, %v565
    %v573 = vmul.f32 %v539, %v571
    %v574 = vsub.f32 %v390, %v572
    %v575 = vsub.f32 %v391, %v573
    %v576 = vmul.f32 %v538, %v408
    %v577 = vmul.f32 %v539, %v409
    %v578 = vrot.slane %v576, 4
    %v579 = vadd.f32 %v576, %v578
    %v580 = vrot.slane %v579, 2
    %v581 = vadd.f32 %v579, %v580
    %v582 = vrot.slane %v581, 1
    %v583 = vadd.f32 %v581, %v582
    %v584 = vrot.slane %v577, 4
    %v585 = vadd.f32 %v577, %v584
    %v586 = vrot.slane %v585, 2
    %v587 = vadd.f32 %v585, %v586
    %v588 = vrot.slane %v587, 1
    %v589 = vadd.f32 %v587, %v588
    %v590 = vmul.f32 %v538, %v583
    %v591 = vmul.f32 %v539, %v589
    %v592 = vsub.f32 %v408, %v590
    %v593 = vsub.f32 %v409, %v591
    %v594 = vmul.f32 %v538, %v426
    %v595 = vmul.f32 %v539, %v427
    %v596 = vrot.slane %v594, 4
    %v597 = vadd.f32 %v594, %v596
    %v598 = vrot.slane %v597, 2
    %v599 = vadd.f32 %v597, %v598
    %v600 = vrot.slane %v599, 1
    %v601 = vadd.f32 %v599, %v600
    %v602 = vrot.slane %v595, 4
    %v603 = vadd.f32 %v595, %v602
    %v604 = vrot.slane %v603, 2
    %v605 = vadd.f32 %v603, %v604
    %v606 = vrot.slane %v605, 1
    %v607 = vadd.f32 %v605, %v606
    %v608 = vmul.f32 %v538, %v601
    %v609 = vmul.f32 %v539, %v607
    %v610 = vsub.f32 %v426, %v608
    %v611 = vsub.f32 %v427, %v609
    %v612 = vmul.f32 %v538, %v444
    %v613 = vmul.f32 %v539, %v445
    %v614 = vrot.slane %v612, 4
    %v615 = vadd.f32 %v612, %v614
    %v616 = vrot.slane %v615, 2
    %v617 = vadd.f32 %v615, %v616
    %v618 = vrot.slane %v617, 1
    %v619 = vadd.f32 %v617, %v618
    %v620 = vrot.slane %v613, 4
    %v621 = vadd.f32 %v613, %v620
    %v622 = vrot.slane %v621, 2
    %v623 = vadd.f32 %v621, %v622
    %v624 = vrot.slane %v623, 1
    %v625 = vadd.f32 %v623, %v624
    %v626 = vmul.f32 %v538, %v619
    %v627 = vmul.f32 %v539, %v625
    %v628 = vsub.f32 %v444, %v626
    %v629 = vsub.f32 %v445, %v627
    %v630 = vmul.f32 %v538, %v462
    %v631 = vmul.f32 %v539, %v463
    %v632 = vrot.slane %v630, 4
    %v633 = vadd.f32 %v630, %v632
    %v634 = vrot.slane %v633, 2
    %v635 = vadd.f32 %v633, %v634
    %v636 = vrot.slane %v635, 1
    %v637 = vadd.f32 %v635, %v636
    %v638 = vrot.slane %v631, 4
    %v639 = vadd.f32 %v631, %v638
    %v640 = vrot.slane %v639, 2
    %v641 = vadd.f32 %v639, %v640
    %v642 = vrot.slane %v641, 1
    %v643 = vadd.f32 %v641, %v642
    %v644 = vmul.f32 %v538, %v637
    %v645 = vmul.f32 %v539, %v643
    %v646 = vsub.f32 %v462, %v644
    %v647 = vsub.f32 %v463, %v645
    %v648 = vmul.f32 %v556, %v556
    %v649 = vmul.f32 %v557, %v557
    %v650 = vrot.slane %v648, 4
    %v651 = vadd.f32 %v648, %v650
    %v652 = vrot.slane %v651, 2
    %v653 = vadd.f32 %v651, %v652
    %v654 = vrot.slane %v653, 1
    %v655 = vadd.f32 %v653, %v654
    %v656 = vrot.slane %v649, 4
    %v657 = vadd.f32 %v649, %v656
    %v658 = vrot.slane %v657, 2
    %v659 = vadd.f32 %v657, %v658
    %v660 = vrot.slane %v659, 1
    %v661 = vadd.f32 %v659, %v660
    %v662 = vrsqrt.pop %v655
    %v663 = vmul.f32 %v662, %v655
    %v664 = vmul.f32 %v663, %v662
    %v665 = vmul.f32 0.5, %v664
    %v666 = vsub.f32 1.5, %v665
    %v667 = vmul.f32 %v662, %v666
    %v668 = vmul.f32 %v655, %v667
    %vm669 = vcmp.eq.f32.partialorder %v655, inf
    %v670 = vsel %vm669, %v655, %v668
    %vm671 = vcmp.eq.f32.partialorder %v655, 0.0
    %v672 = vand.u32 %v655, 2147483648
    %v673 = vsel %vm671, %v672, %v670
    %v674 = vrsqrt.pop %v661
    %v675 = vmul.f32 %v674, %v661
    %v676 = vmul.f32 %v675, %v674
    %v677 = vmul.f32 0.5, %v676
    %v678 = vsub.f32 1.5, %v677
    %v679 = vmul.f32 %v674, %v678
    %v680 = vmul.f32 %v661, %v679
    %vm681 = vcmp.eq.f32.partialorder %v661, inf
    %v682 = vsel %vm681, %v661, %v680
    %vm683 = vcmp.eq.f32.partialorder %v661, 0.0
    %v684 = vand.u32 %v661, 2147483648
    %v685 = vsel %vm683, %v684, %v682
    %v686 = vadd.f32 %v673, 1e-08
    %v687 = vadd.f32 %v685, 1e-08
    %v688 = vrcp.pop %v686
    %v689 = vmul.f32 %v686, %v688
    %v690 = vsub.f32 1.0, %v689
    %v691 = vmul.f32 %v688, %v690
    %v692 = vadd.f32 %v688, %v691
    %vm693 = vweird.f32 %v686
    %vm694 = vweird.f32 %v688
    %vm695 = vmor %vm693, %vm694
    %v696 = vsel %vm695, %v688, %v692
    %v697 = vand.u32 2147483647, %v686
    %vm698 = vcmp.eq.f32.partialorder %v697, 8.507059e+37
    %v699 = vand.u32 %v686, 2147483648
    %v700 = vor.u32 1.1754944e-38, %v699
    %v701 = vsel %vm698, %v700, %v696
    %v702 = vmul.f32 1.0, %v701
    %v703 = vrcp.pop %v687
    %v704 = vmul.f32 %v687, %v703
    %v705 = vsub.f32 1.0, %v704
    %v706 = vmul.f32 %v703, %v705
    %v707 = vadd.f32 %v703, %v706
    %vm708 = vweird.f32 %v687
    %vm709 = vweird.f32 %v703
    %vm710 = vmor %vm708, %vm709
    %v711 = vsel %vm710, %v703, %v707
    %v712 = vand.u32 2147483647, %v687
    %vm713 = vcmp.eq.f32.partialorder %v712, 8.507059e+37
    %v714 = vand.u32 %v687, 2147483648
    %v715 = vor.u32 1.1754944e-38, %v714
    %v716 = vsel %vm713, %v715, %v711
    %v717 = vmul.f32 1.0, %v716
    %v718 = vmul.f32 %v556, %v702
    %v719 = vmul.f32 %v557, %v717
    %vm720 = vcmp.ne.f32.partialorder %v718, %v718
    %vm721 = vcmp.ne.f32.partialorder %v719, %v719
    %v722 = vsel %vm720, 0.0, %v718
    %v723 = vsel %vm721, 0.0, %v719
    %v724 = vmul.f32 %v722, %v574
    %v725 = vmul.f32 %v723, %v575
    %v726 = vrot.slane %v724, 4
    %v727 = vadd.f32 %v724, %v726
    %v728 = vrot.slane %v727, 2
    %v729 = vadd.f32 %v727, %v728
    %v730 = vrot.slane %v729, 1
    %v731 = vadd.f32 %v729, %v730
    %v732 = vrot.slane %v725, 4
    %v733 = vadd.f32 %v725, %v732
    %v734 = vrot.slane %v733, 2
    %v735 = vadd.f32 %v733, %v734
    %v736 = vrot.slane %v735, 1
    %v737 = vadd.f32 %v735, %v736
    %v738 = vmul.f32 %v722, %v731
    %v739 = vmul.f32 %v723, %v737
    %v740 = vsub.f32 %v574, %v738
    %v741 = vsub.f32 %v575, %v739
    %v742 = vmul.f32 %v722, %v592
    %v743 = vmul.f32 %v723, %v593
    %v744 = vrot.slane %v742, 4
    %v745 = vadd.f32 %v742, %v744
    %v746 = vrot.slane %v745, 2
    %v747 = vadd.f32 %v745, %v746
    %v748 = vrot.slane %v747, 1
    %v749 = vadd.f32 %v747, %v748
    %v750 = vrot.slane %v743, 4
    %v751 = vadd.f32 %v743, %v750
    %v752 = vrot.slane %v751, 2
    %v753 = vadd.f32 %v751, %v752
    %v754 = vrot.slane %v753, 1
    %v755 = vadd.f32 %v753, %v754
    %v756 = vmul.f32 %v722, %v749
    %v757 = vmul.f32 %v723, %v755
    %v758 = vsub.f32 %v592, %v756
    %v759 = vsub.f32 %v593, %v757
    %v760 = vmul.f32 %v722, %v610
    %v761 = vmul.f32 %v723, %v611
    %v762 = vrot.slane %v760, 4
    %v763 = vadd.f32 %v760, %v762
    %v764 = vrot.slane %v763, 2
    %v765 = vadd.f32 %v763, %v764
    %v766 = vrot.slane %v765, 1
    %v767 = vadd.f32 %v765, %v766
    %v768 = vrot.slane %v761, 4
    %v769 = vadd.f32 %v761, %v768
    %v770 = vrot.slane %v769, 2
    %v771 = vadd.f32 %v769, %v770
    %v772 = vrot.slane %v771, 1
    %v773 = vadd.f32 %v771, %v772
    %v774 = vmul.f32 %v722, %v767
    %v775 = vmul.f32 %v723, %v773
    %v776 = vsub.f32 %v610, %v774
    %v777 = vsub.f32 %v611, %v775
    %v778 = vmul.f32 %v722, %v628
    %v779 = vmul.f32 %v723, %v629
    %v780 = vrot.slane %v778, 4
    %v781 = vadd.f32 %v778, %v780
    %v782 = vrot.slane %v781, 2
    %v783 = vadd.f32 %v781, %v782
    %v784 = vrot.slane %v783, 1
    %v785 = vadd.f32 %v783, %v784
    %v786 = vrot.slane %v779, 4
    %v787 = vadd.f32 %v779, %v786
    %v788 = vrot.slane %v787, 2
    %v789 = vadd.f32 %v787, %v788
    %v790 = vrot.slane %v789, 1
    %v791 = vadd.f32 %v789, %v790
    %v792 = vmul.f32 %v722, %v785
    %v793 = vmul.f32 %v723, %v791
    %v794 = vsub.f32 %v628, %v792
    %v795 = vsub.f32 %v629, %v793
    %v796 = vmul.f32 %v722, %v646
    %v797 = vmul.f32 %v723, %v647
    %v798 = vrot.slane %v796, 4
    %v799 = vadd.f32 %v796, %v798
    %v800 = vrot.slane %v799, 2
    %v801 = vadd.f32 %v799, %v800
    %v802 = vrot.slane %v801, 1
    %v803 = vadd.f32 %v801, %v802
    %v804 = vrot.slane %v797, 4
    %v805 = vadd.f32 %v797, %v804
    %v806 = vrot.slane %v805, 2
    %v807 = vadd.f32 %v805, %v806
    %v808 = vrot.slane %v807, 1
    %v809 = vadd.f32 %v807, %v808
    %v810 = vmul.f32 %v722, %v803
    %v811 = vmul.f32 %v723, %v809
    %v812 = vsub.f32 %v646, %v810
    %v813 = vsub.f32 %v647, %v811
    %v814 = vmul.f32 %v740, %v740
    %v815 = vmul.f32 %v741, %v741
    %v816 = vrot.slane %v814, 4
    %v817 = vadd.f32 %v814, %v816
    %v818 = vrot.slane %v817, 2
    %v819 = vadd.f32 %v817, %v818
    %v820 = vrot.slane %v819, 1
    %v821 = vadd.f32 %v819, %v820
    %v822 = vrot.slane %v815, 4
    %v823 = vadd.f32 %v815, %v822
    %v824 = vrot.slane %v823, 2
    %v825 = vadd.f32 %v823, %v824
    %v826 = vrot.slane %v825, 1
    %v827 = vadd.f32 %v825, %v826
    %v828 = vrsqrt.pop %v821
    %v829 = vmul.f32 %v828, %v821
    %v830 = vmul.f32 %v829, %v828
    %v831 = vmul.f32 0.5, %v830
    %v832 = vsub.f32 1.5, %v831
    %v833 = vmul.f32 %v828, %v832
    %v834 = vmul.f32 %v821, %v833
    %vm835 = vcmp.eq.f32.partialorder %v821, inf
    %v836 = vsel %vm835, %v821, %v834
    %vm837 = vcmp.eq.f32.partialorder %v821, 0.0
    %v838 = vand.u32 %v821, 2147483648
    %v839 = vsel %vm837, %v838, %v836
    %v840 = vrsqrt.pop %v827
    %v841 = vmul.f32 %v840, %v827
    %v842 = vmul.f32 %v841, %v840
    %v843 = vmul.f32 0.5, %v842
    %v844 = vsub.f32 1.5, %v843
    %v845 = vmul.f32 %v840, %v844
    %v846 = vmul.f32 %v827, %v845
    %vm847 = vcmp.eq.f32.partialorder %v827, inf
    %v848 = vsel %vm847, %v827, %v846
    %vm849 = vcmp.eq.f32.partialorder %v827, 0.0
    %v850 = vand.u32 %v827, 2147483648
    %v851 = vsel %vm849, %v850, %v848
    %v852 = vadd.f32 %v839, 1e-08
    %v853 = vadd.f32 %v851, 1e-08
    %v854 = vrcp.pop %v852
    %v855 = vmul.f32 %v852, %v854
    %v856 = vsub.f32 1.0, %v855
    %v857 = vmul.f32 %v854, %v856
    %v858 = vadd.f32 %v854, %v857
    %vm859 = vweird.f32 %v852
    %vm860 = vweird.f32 %v854
    %vm861 = vmor %vm859, %vm860
    %v862 = vsel %vm861, %v854, %v858
    %v863 = vand.u32 2147483647, %v852
    %vm864 = vcmp.eq.f32.partialorder %v863, 8.507059e+37
    %v865 = vand.u32 %v852, 2147483648
    %v866 = vor.u32 1.1754944e-38, %v865
    %v867 = vsel %vm864, %v866, %v862
    %v868 = vmul.f32 1.0, %v867
    %v869 = vrcp.pop %v853
    %v870 = vmul.f32 %v853, %v869
    %v871 = vsub.f32 1.0, %v870
    %v872 = vmul.f32 %v869, %v871
    %v873 = vadd.f32 %v869, %v872
    %vm874 = vweird.f32 %v853
    %vm875 = vweird.f32 %v869
    %vm876 = vmor %vm874, %vm875
    %v877 = vsel %vm876, %v869, %v873
    %v878 = vand.u32 2147483647, %v853
    %vm879 = vcmp.eq.f32.partialorder %v878, 8.507059e+37
    %v880 = vand.u32 %v853, 2147483648
    %v881 = vor.u32 1.1754944e-38, %v880
    %v882 = vsel %vm879, %v881, %v877
    %v883 = vmul.f32 1.0, %v882
    %v884 = vmul.f32 %v740, %v868
    %v885 = vmul.f32 %v741, %v883
    %vm886 = vcmp.ne.f32.partialorder %v884, %v884
    %vm887 = vcmp.ne.f32.partialorder %v885, %v885
    %v888 = vsel %vm886, 0.0, %v884
    %v889 = vsel %vm887, 0.0, %v885
    %v890 = vmul.f32 %v888, %v758
    %v891 = vmul.f32 %v889, %v759
    %v892 = vrot.slane %v890, 4
    %v893 = vadd.f32 %v890, %v892
    %v894 = vrot.slane %v893, 2
    %v895 = vadd.f32 %v893, %v894
    %v896 = vrot.slane %v895, 1
    %v897 = vadd.f32 %v895, %v896
    %v898 = vrot.slane %v891, 4
    %v899 = vadd.f32 %v891, %v898
    %v900 = vrot.slane %v899, 2
    %v901 = vadd.f32 %v899, %v900
    %v902 = vrot.slane %v901, 1
    %v903 = vadd.f32 %v901, %v902
    %v904 = vmul.f32 %v888, %v897
    %v905 = vmul.f32 %v889, %v903
    %v906 = vsub.f32 %v758, %v904
    %v907 = vsub.f32 %v759, %v905
    %v908 = vmul.f32 %v888, %v776
    %v909 = vmul.f32 %v889, %v777
    %v910 = vrot.slane %v908, 4
    %v911 = vadd.f32 %v908, %v910
    %v912 = vrot.slane %v911, 2
    %v913 = vadd.f32 %v911, %v912
    %v914 = vrot.slane %v913, 1
    %v915 = vadd.f32 %v913, %v914
    %v916 = vrot.slane %v909, 4
    %v917 = vadd.f32 %v909, %v916
    %v918 = vrot.slane %v917, 2
    %v919 = vadd.f32 %v917, %v918
    %v920 = vrot.slane %v919, 1
    %v921 = vadd.f32 %v919, %v920
    %v922 = vmul.f32 %v888, %v915
    %v923 = vmul.f32 %v889, %v921
    %v924 = vsub.f32 %v776, %v922
    %v925 = vsub.f32 %v777, %v923
    %v926 = vmul.f32 %v888, %v794
    %v927 = vmul.f32 %v889, %v795
    %v928 = vrot.slane %v926, 4
    %v929 = vadd.f32 %v926, %v928
    %v930 = vrot.slane %v929, 2
    %v931 = vadd.f32 %v929, %v930
    %v932 = vrot.slane %v931, 1
    %v933 = vadd.f32 %v931, %v932
    %v934 = vrot.slane %v927, 4
    %v935 = vadd.f32 %v927, %v934
    %v936 = vrot.slane %v935, 2
    %v937 = vadd.f32 %v935, %v936
    %v938 = vrot.slane %v937, 1
    %v939 = vadd.f32 %v937, %v938
    %v940 = vmul.f32 %v888, %v933
    %v941 = vmul.f32 %v889, %v939
    %v942 = vsub.f32 %v794, %v940
    %v943 = vsub.f32 %v795, %v941
    %v944 = vmul.f32 %v888, %v812
    %v945 = vmul.f32 %v889, %v813
    %v946 = vrot.slane %v944, 4
    %v947 = vadd.f32 %v944, %v946
    %v948 = vrot.slane %v947, 2
    %v949 = vadd.f32 %v947, %v948
    %v950 = vrot.slane %v949, 1
    %v951 = vadd.f32 %v949, %v950
    %v952 = vrot.slane %v945, 4
    %v953 = vadd.f32 %v945, %v952
    %v954 = vrot.slane %v953, 2
    %v955 = vadd.f32 %v953, %v954
    %v956 = vrot.slane %v955, 1
    %v957 = vadd.f32 %v955, %v956
    %v958 = vmul.f32 %v888, %v951
    %v959 = vmul.f32 %v889, %v957
    %v960 = vsub.f32 %v812, %v958
    %v961 = vsub.f32 %v813, %v959
    %v962 = vmul.f32 %v906, %v906
    %v963 = vmul.f32 %v907, %v907
    %v964 = vrot.slane %v962, 4
    %v965 = vadd.f32 %v962, %v964
    %v966 = vrot.slane %v965, 2
    %v967 = vadd.f32 %v965, %v966
    %v968 = vrot.slane %v967, 1
    %v969 = vadd.f32 %v967, %v968
    %v970 = vrot.slane %v963, 4
    %v971 = vadd.f32 %v963, %v970
    %v972 = vrot.slane %v971, 2
    %v973 = vadd.f32 %v971, %v972
    %v974 = vrot.slane %v973, 1
    %v975 = vadd.f32 %v973, %v974
    %v976 = vrsqrt.pop %v969
    %v977 = vmul.f32 %v976, %v969
    %v978 = vmul.f32 %v977, %v976
    %v979 = vmul.f32 0.5, %v978
    %v980 = vsub.f32 1.5, %v979
    %v981 = vmul.f32 %v976, %v980
    %v982 = vmul.f32 %v969, %v981
    %vm983 = vcmp.eq.f32.partialorder %v969, inf
    %v984 = vsel %vm983, %v969, %v982
    %vm985 = vcmp.eq.f32.partialorder %v969, 0.0
    %v986 = vand.u32 %v969, 2147483648
    %v987 = vsel %vm985, %v986, %v984
    %v988 = vrsqrt.pop %v975
    %v989 = vmul.f32 %v988, %v975
    %v990 = vmul.f32 %v989, %v988
    %v991 = vmul.f32 0.5, %v990
    %v992 = vsub.f32 1.5, %v991
    %v993 = vmul.f32 %v988, %v992
    %v994 = vmul.f32 %v975, %v993
    %vm995 = vcmp.eq.f32.partialorder %v975, inf
    %v996 = vsel %vm995, %v975, %v994
    %vm997 = vcmp.eq.f32.partialorder %v975, 0.0
    %v998 = vand.u32 %v975, 2147483648
    %v999 = vsel %vm997, %v998, %v996
    %v1000 = vadd.f32 %v987, 1e-08
    %v1001 = vadd.f32 %v999, 1e-08
    %v1002 = vrcp.pop %v1000
    %v1003 = vmul.f32 %v1000, %v1002
    %v1004 = vsub.f32 1.0, %v1003
    %v1005 = vmul.f32 %v1002, %v1004
    %v1006 = vadd.f32 %v1002, %v1005
    %vm1007 = vweird.f32 %v1000
    %vm1008 = vweird.f32 %v1002
    %vm1009 = vmor %vm1007, %vm1008
    %v1010 = vsel %vm1009, %v1002, %v1006
    %v1011 = vand.u32 2147483647, %v1000
    %vm1012 = vcmp.eq.f32.partialorder %v1011, 8.507059e+37
    %v1013 = vand.u32 %v1000, 2147483648
    %v1014 = vor.u32 1.1754944e-38, %v1013
    %v1015 = vsel %vm1012, %v1014, %v1010
    %v1016 = vmul.f32 1.0, %v1015
    %v1017 = vrcp.pop %v1001
    %v1018 = vmul.f32 %v1001, %v1017
    %v1019 = vsub.f32 1.0, %v1018
    %v1020 = vmul.f32 %v1017, %v1019
    %v1021 = vadd.f32 %v1017, %v1020
    %vm1022 = vweird.f32 %v1001
    %vm1023 = vweird.f32 %v1017
    %vm1024 = vmor %vm1022, %vm1023
    %v1025 = vsel %vm1024, %v1017, %v1021
    %v1026 = vand.u32 2147483647, %v1001
    %vm1027 = vcmp.eq.f32.partialorder %v1026, 8.507059e+37
    %v1028 = vand.u32 %v1001, 2147483648
    %v1029 = vor.u32 1.1754944e-38, %v1028
    %v1030 = vsel %vm1027, %v1029, %v1025
    %v1031 = vmul.f32 1.0, %v1030
    %v1032 = vmul.f32 %v906, %v1016
    %v1033 = vmul.f32 %v907, %v1031
    %vm1034 = vcmp.ne.f32.partialorder %v1032, %v1032
    %vm1035 = vcmp.ne.f32.partialorder %v1033, %v1033
    %v1036 = vsel %vm1034, 0.0, %v1032
    %v1037 = vsel %vm1035, 0.0, %v1033
    %v1038 = vmul.f32 %v1036, %v924
    %v1039 = vmul.f32 %v1037, %v925
    %v1040 = vrot.slane %v1038, 4
    %v1041 = vadd.f32 %v1038, %v1040
    %v1042 = vrot.slane %v1041, 2
    %v1043 = vadd.f32 %v1041, %v1042
    %v1044 = vrot.slane %v1043, 1
    %v1045 = vadd.f32 %v1043, %v1044
    %v1046 = vrot.slane %v1039, 4
    %v1047 = vadd.f32 %v1039, %v1046
    %v1048 = vrot.slane %v1047, 2
    %v1049 = vadd.f32 %v1047, %v1048
    %v1050 = vrot.slane %v1049, 1
    %v1051 = vadd.f32 %v1049, %v1050
    %v1052 = vmul.f32 %v1036, %v1045
    %v1053 = vmul.f32 %v1037, %v1051
    %v1054 = vsub.f32 %v924, %v1052
    %v1055 = vsub.f32 %v925, %v1053
    %v1056 = vmul.f32 %v1036, %v942
    %v1057 = vmul.f32 %v1037, %v943
    %v1058 = vrot.slane %v1056, 4
    %v1059 = vadd.f32 %v1056, %v1058
    %v1060 = vrot.slane %v1059, 2
    %v1061 = vadd.f32 %v1059, %v1060
    %v1062 = vrot.slane %v1061, 1
    %v1063 = vadd.f32 %v1061, %v1062
    %v1064 = vrot.slane %v1057, 4
    %v1065 = vadd.f32 %v1057, %v1064
    %v1066 = vrot.slane %v1065, 2
    %v1067 = vadd.f32 %v1065, %v1066
    %v1068 = vrot.slane %v1067, 1
    %v1069 = vadd.f32 %v1067, %v1068
    %v1070 = vmul.f32 %v1036, %v1063
    %v1071 = vmul.f32 %v1037, %v1069
    %v1072 = vsub.f32 %v942, %v1070
    %v1073 = vsub.f32 %v943, %v1071
    %v1074 = vmul.f32 %v1036, %v960
    %v1075 = vmul.f32 %v1037, %v961
    %v1076 = vrot.slane %v1074, 4
    %v1077 = vadd.f32 %v1074, %v1076
    %v1078 = vrot.slane %v1077, 2
    %v1079 = vadd.f32 %v1077, %v1078
    %v1080 = vrot.slane %v1079, 1
    %v1081 = vadd.f32 %v1079, %v1080
    %v1082 = vrot.slane %v1075, 4
    %v1083 = vadd.f32 %v1075, %v1082
    %v1084 = vrot.slane %v1083, 2
    %v1085 = vadd.f32 %v1083, %v1084
    %v1086 = vrot.slane %v1085, 1
    %v1087 = vadd.f32 %v1085, %v1086
    %v1088 = vmul.f32 %v1036, %v1081
    %v1089 = vmul.f32 %v1037, %v1087
    %v1090 = vsub.f32 %v960, %v1088
    %v1091 = vsub.f32 %v961, %v1089
    %v1092 = vmul.f32 %v1054, %v1054
    %v1093 = vmul.f32 %v1055, %v1055
    %v1094 = vrot.slane %v1092, 4
    %v1095 = vadd.f32 %v1092, %v1094
    %v1096 = vrot.slane %v1095, 2
    %v1097 = vadd.f32 %v1095, %v1096
    %v1098 = vrot.slane %v1097, 1
    %v1099 = vadd.f32 %v1097, %v1098
    %v1100 = vrot.slane %v1093, 4
    %v1101 = vadd.f32 %v1093, %v1100
    %v1102 = vrot.slane %v1101, 2
    %v1103 = vadd.f32 %v1101, %v1102
    %v1104 = vrot.slane %v1103, 1
    %v1105 = vadd.f32 %v1103, %v1104
    %v1106 = vrsqrt.pop %v1099
    %v1107 = vmul.f32 %v1106, %v1099
    %v1108 = vmul.f32 %v1107, %v1106
    %v1109 = vmul.f32 0.5, %v1108
    %v1110 = vsub.f32 1.5, %v1109
    %v1111 = vmul.f32 %v1106, %v1110
    %v1112 = vmul.f32 %v1099, %v1111
    %vm1113 = vcmp.eq.f32.partialorder %v1099, inf
    %v1114 = vsel %vm1113, %v1099, %v1112
    %vm1115 = vcmp.eq.f32.partialorder %v1099, 0.0
    %v1116 = vand.u32 %v1099, 2147483648
    %v1117 = vsel %vm1115, %v1116, %v1114
    %v1118 = vrsqrt.pop %v1105
    %v1119 = vmul.f32 %v1118, %v1105
    %v1120 = vmul.f32 %v1119, %v1118
    %v1121 = vmul.f32 0.5, %v1120
    %v1122 = vsub.f32 1.5, %v1121
    %v1123 = vmul.f32 %v1118, %v1122
    %v1124 = vmul.f32 %v1105, %v1123
    %vm1125 = vcmp.eq.f32.partialorder %v1105, inf
    %v1126 = vsel %vm1125, %v1105, %v1124
    %vm1127 = vcmp.eq.f32.partialorder %v1105, 0.0
    %v1128 = vand.u32 %v1105, 2147483648
    %v1129 = vsel %vm1127, %v1128, %v1126
    %v1130 = vadd.f32 %v1117, 1e-08
    %v1131 = vadd.f32 %v1129, 1e-08
    %v1132 = vrcp.pop %v1130
    %v1133 = vmul.f32 %v1130, %v1132
    %v1134 = vsub.f32 1.0, %v1133
    %v1135 = vmul.f32 %v1132, %v1134
    %v1136 = vadd.f32 %v1132, %v1135
    %vm1137 = vweird.f32 %v1130
    %vm1138 = vweird.f32 %v1132
    %vm1139 = vmor %vm1137, %vm1138
    %v1140 = vsel %vm1139, %v1132, %v1136
    %v1141 = vand.u32 2147483647, %v1130
    %vm1142 = vcmp.eq.f32.partialorder %v1141, 8.507059e+37
    %v1143 = vand.u32 %v1130, 2147483648
    %v1144 = vor.u32 1.1754944e-38, %v1143
    %v1145 = vsel %vm1142, %v1144, %v1140
    %v1146 = vmul.f32 1.0, %v1145
    %v1147 = vrcp.pop %v1131
    %v1148 = vmul.f32 %v1131, %v1147
    %v1149 = vsub.f32 1.0, %v1148
    %v1150 = vmul.f32 %v1147, %v1149
    %v1151 = vadd.f32 %v1147, %v1150
    %vm1152 = vweird.f32 %v1131
    %vm1153 = vweird.f32 %v1147
    %vm1154 = vmor %vm1152, %vm1153
    %v1155 = vsel %vm1154, %v1147, %v1151
    %v1156 = vand.u32 2147483647, %v1131
    %vm1157 = vcmp.eq.f32.partialorder %v1156, 8.507059e+37
    %v1158 = vand.u32 %v1131, 2147483648
    %v1159 = vor.u32 1.1754944e-38, %v1158
    %v1160 = vsel %vm1157, %v1159, %v1155
    %v1161 = vmul.f32 1.0, %v1160
    %v1162 = vmul.f32 %v1054, %v1146
    %v1163 = vmul.f32 %v1055, %v1161
    %vm1164 = vcmp.ne.f32.partialorder %v1162, %v1162
    %vm1165 = vcmp.ne.f32.partialorder %v1163, %v1163
    %v1166 = vsel %vm1164, 0.0, %v1162
    %v1167 = vsel %vm1165, 0.0, %v1163
    %v1168 = vmul.f32 %v1166, %v1072
    %v1169 = vmul.f32 %v1167, %v1073
    %v1170 = vrot.slane %v1168, 4
    %v1171 = vadd.f32 %v1168, %v1170
    %v1172 = vrot.slane %v1171, 2
    %v1173 = vadd.f32 %v1171, %v1172
    %v1174 = vrot.slane %v1173, 1
    %v1175 = vadd.f32 %v1173, %v1174
    %v1176 = vrot.slane %v1169, 4
    %v1177 = vadd.f32 %v1169, %v1176
    %v1178 = vrot.slane %v1177, 2
    %v1179 = vadd.f32 %v1177, %v1178
    %v1180 = vrot.slane %v1179, 1
    %v1181 = vadd.f32 %v1179, %v1180
    %v1182 = vmul.f32 %v1166, %v1175
    %v1183 = vmul.f32 %v1167, %v1181
    %v1184 = vsub.f32 %v1072, %v1182
    %v1185 = vsub.f32 %v1073, %v1183
    %v1186 = vmul.f32 %v1166, %v1090
    %v1187 = vmul.f32 %v1167, %v1091
    %v1188 = vrot.slane %v1186, 4
    %v1189 = vadd.f32 %v1186, %v1188
    %v1190 = vrot.slane %v1189, 2
    %v1191 = vadd.f32 %v1189, %v1190
    %v1192 = vrot.slane %v1191, 1
    %v1193 = vadd.f32 %v1191, %v1192
    %v1194 = vrot.slane %v1187, 4
    %v1195 = vadd.f32 %v1187, %v1194
    %v1196 = vrot.slane %v1195, 2
    %v1197 = vadd.f32 %v1195, %v1196
    %v1198 = vrot.slane %v1197, 1
    %v1199 = vadd.f32 %v1197, %v1198
    %v1200 = vmul.f32 %v1166, %v1193
    %v1201 = vmul.f32 %v1167, %v1199
    %v1202 = vsub.f32 %v1090, %v1200
    %v1203 = vsub.f32 %v1091, %v1201
    %v1204 = vmul.f32 %v1184, %v1184
    %v1205 = vmul.f32 %v1185, %v1185
    %v1206 = vrot.slane %v1204, 4
    %v1207 = vadd.f32 %v1204, %v1206
    %v1208 = vrot.slane %v1207, 2
    %v1209 = vadd.f32 %v1207, %v1208
    %v1210 = vrot.slane %v1209, 1
    %v1211 = vadd.f32 %v1209, %v1210
    %v1212 = vrot.slane %v1205, 4
    %v1213 = vadd.f32 %v1205, %v1212
    %v1214 = vrot.slane %v1213, 2
    %v1215 = vadd.f32 %v1213, %v1214
    %v1216 = vrot.slane %v1215, 1
    %v1217 = vadd.f32 %v1215, %v1216
    %v1218 = vrsqrt.pop %v1211
    %v1219 = vmul.f32 %v1218, %v1211
    %v1220 = vmul.f32 %v1219, %v1218
    %v1221 = vmul.f32 0.5, %v1220
    %v1222 = vsub.f32 1.5, %v1221
    %v1223 = vmul.f32 %v1218, %v1222
    %v1224 = vmul.f32 %v1211, %v1223
    %vm1225 = vcmp.eq.f32.partialorder %v1211, inf
    %v1226 = vsel %vm1225, %v1211, %v1224
    %vm1227 = vcmp.eq.f32.partialorder %v1211, 0.0
    %v1228 = vand.u32 %v1211, 2147483648
    %v1229 = vsel %vm1227, %v1228, %v1226
    %v1230 = vrsqrt.pop %v1217
    %v1231 = vmul.f32 %v1230, %v1217
    %v1232 = vmul.f32 %v1231, %v1230
    %v1233 = vmul.f32 0.5, %v1232
    %v1234 = vsub.f32 1.5, %v1233
    %v1235 = vmul.f32 %v1230, %v1234
    %v1236 = vmul.f32 %v1217, %v1235
    %vm1237 = vcmp.eq.f32.partialorder %v1217, inf
    %v1238 = vsel %vm1237, %v1217, %v1236
    %vm1239 = vcmp.eq.f32.partialorder %v1217, 0.0
    %v1240 = vand.u32 %v1217, 2147483648
    %v1241 = vsel %vm1239, %v1240, %v1238
    %v1242 = vadd.f32 %v1229, 1e-08
    %v1243 = vadd.f32 %v1241, 1e-08
    %v1244 = vrcp.pop %v1242
    %v1245 = vmul.f32 %v1242, %v1244
    %v1246 = vsub.f32 1.0, %v1245
    %v1247 = vmul.f32 %v1244, %v1246
    %v1248 = vadd.f32 %v1244, %v1247
    %vm1249 = vweird.f32 %v1242
    %vm1250 = vweird.f32 %v1244
    %vm1251 = vmor %vm1249, %vm1250
    %v1252 = vsel %vm1251, %v1244, %v1248
    %v1253 = vand.u32 2147483647, %v1242
    %vm1254 = vcmp.eq.f32.partialorder %v1253, 8.507059e+37
    %v1255 = vand.u32 %v1242, 2147483648
    %v1256 = vor.u32 1.1754944e-38, %v1255
    %v1257 = vsel %vm1254, %v1256, %v1252
    %v1258 = vmul.f32 1.0, %v1257
    %v1259 = vrcp.pop %v1243
    %v1260 = vmul.f32 %v1243, %v1259
    %v1261 = vsub.f32 1.0, %v1260
    %v1262 = vmul.f32 %v1259, %v1261
    %v1263 = vadd.f32 %v1259, %v1262
    %vm1264 = vweird.f32 %v1243
    %vm1265 = vweird.f32 %v1259
    %vm1266 = vmor %vm1264, %vm1265
    %v1267 = vsel %vm1266, %v1259, %v1263
    %v1268 = vand.u32 2147483647, %v1243
    %vm1269 = vcmp.eq.f32.partialorder %v1268, 8.507059e+37
    %v1270 = vand.u32 %v1243, 2147483648
    %v1271 = vor.u32 1.1754944e-38, %v1270
    %v1272 = vsel %vm1269, %v1271, %v1267
    %v1273 = vmul.f32 1.0, %v1272
    %v1274 = vmul.f32 %v1184, %v1258
    %v1275 = vmul.f32 %v1185, %v1273
    %vm1276 = vcmp.ne.f32.partialorder %v1274, %v1274
    %vm1277 = vcmp.ne.f32.partialorder %v1275, %v1275
    %v1278 = vsel %vm1276, 0.0, %v1274
    %v1279 = vsel %vm1277, 0.0, %v1275
    %v1280 = vmul.f32 %v1278, %v1202
    %v1281 = vmul.f32 %v1279, %v1203
    %v1282 = vrot.slane %v1280, 4
    %v1283 = vadd.f32 %v1280, %v1282
    %v1284 = vrot.slane %v1283, 2
    %v1285 = vadd.f32 %v1283, %v1284
    %v1286 = vrot.slane %v1285, 1
    %v1287 = vadd.f32 %v1285, %v1286
    %v1288 = vrot.slane %v1281, 4
    %v1289 = vadd.f32 %v1281, %v1288
    %v1290 = vrot.slane %v1289, 2
    %v1291 = vadd.f32 %v1289, %v1290
    %v1292 = vrot.slane %v1291, 1
    %v1293 = vadd.f32 %v1291, %v1292
    %v1294 = vmul.f32 %v1278, %v1287
    %v1295 = vmul.f32 %v1279, %v1293
    %v1296 = vsub.f32 %v1202, %v1294
    %v1297 = vsub.f32 %v1203, %v1295
    %1298 = vst [vmem:[#allocation2] sm:$0xff] %v336
    %1299 = vst [vmem:[#allocation2 + $0x8] sm:$0xff] %v337
    %1300 = vst [vmem:[#allocation2 + $0x10] sm:$0xff] %v538
    %1301 = vst [vmem:[#allocation2 + $0x18] sm:$0xff] %v539
    %1302 = vst [vmem:[#allocation2 + $0x20] sm:$0xff] %v722
    %1303 = vst [vmem:[#allocation2 + $0x28] sm:$0xff] %v723
    %1304 = vst [vmem:[#allocation2 + $0x30] sm:$0xff] %v888
    %1305 = vst [vmem:[#allocation2 + $0x38] sm:$0xff] %v889
    %1306 = vst [vmem:[#allocation2 + $0x40] sm:$0xff] %v1036
    %1307 = vst [vmem:[#allocation2 + $0x48] sm:$0xff] %v1037
    %1308 = vst [vmem:[#allocation2 + $0x50] sm:$0xff] %v1166
    %1309 = vst [vmem:[#allocation2 + $0x58] sm:$0xff] %v1167
    %1310 = vst [vmem:[#allocation2 + $0x60] sm:$0xff] %v1278
    %1311 = vst [vmem:[#allocation2 + $0x68] sm:$0xff] %v1279
    %v1312 = vmul.f32 %v1296, %v1296
    %v1313 = vmul.f32 %v1297, %v1297
    %v1314 = vrot.slane %v1312, 4
    %v1315 = vadd.f32 %v1312, %v1314
    %v1316 = vrot.slane %v1315, 2
    %v1317 = vadd.f32 %v1315, %v1316
    %v1318 = vrot.slane %v1317, 1
    %v1319 = vadd.f32 %v1317, %v1318
    %v1320 = vrot.slane %v1313, 4
    %v1321 = vadd.f32 %v1313, %v1320
    %v1322 = vrot.slane %v1321, 2
    %v1323 = vadd.f32 %v1321, %v1322
    %v1324 = vrot.slane %v1323, 1
    %v1325 = vadd.f32 %v1323, %v1324
    %v1326 = vrsqrt.pop %v1319
    %v1327 = vmul.f32 %v1326, %v1319
    %v1328 = vmul.f32 %v1327, %v1326
    %v1329 = vmul.f32 0.5, %v1328
    %v1330 = vsub.f32 1.5, %v1329
    %v1331 = vmul.f32 %v1326, %v1330
    %v1332 = vmul.f32 %v1319, %v1331
    %vm1333 = vcmp.eq.f32.partialorder %v1319, inf
    %v1334 = vsel %vm1333, %v1319, %v1332
    %vm1335 = vcmp.eq.f32.partialorder %v1319, 0.0
    %v1336 = vand.u32 %v1319, 2147483648
    %v1337 = vsel %vm1335, %v1336, %v1334
    %v1338 = vrsqrt.pop %v1325
    %v1339 = vmul.f32 %v1338, %v1325
    %v1340 = vmul.f32 %v1339, %v1338
    %v1341 = vmul.f32 0.5, %v1340
    %v1342 = vsub.f32 1.5, %v1341
    %v1343 = vmul.f32 %v1338, %v1342
    %v1344 = vmul.f32 %v1325, %v1343
    %vm1345 = vcmp.eq.f32.partialorder %v1325, inf
    %v1346 = vsel %vm1345, %v1325, %v1344
    %vm1347 = vcmp.eq.f32.partialorder %v1325, 0.0
    %v1348 = vand.u32 %v1325, 2147483648
    %v1349 = vsel %vm1347, %v1348, %v1346
    %v1350 = vadd.f32 %v1337, 1e-08
    %v1351 = vadd.f32 %v1349, 1e-08
    %v1352 = vrcp.pop %v1350
    %v1353 = vmul.f32 %v1350, %v1352
    %v1354 = vsub.f32 1.0, %v1353
    %v1355 = vmul.f32 %v1352, %v1354
    %v1356 = vadd.f32 %v1352, %v1355
    %vm1357 = vweird.f32 %v1350
    %vm1358 = vweird.f32 %v1352
    %vm1359 = vmor %vm1357, %vm1358
    %v1360 = vsel %vm1359, %v1352, %v1356
    %v1361 = vand.u32 2147483647, %v1350
    %vm1362 = vcmp.eq.f32.partialorder %v1361, 8.507059e+37
    %v1363 = vand.u32 %v1350, 2147483648
    %v1364 = vor.u32 1.1754944e-38, %v1363
    %v1365 = vsel %vm1362, %v1364, %v1360
    %v1366 = vmul.f32 1.0, %v1365
    %v1367 = vrcp.pop %v1351
    %v1368 = vmul.f32 %v1351, %v1367
    %v1369 = vsub.f32 1.0, %v1368
    %v1370 = vmul.f32 %v1367, %v1369
    %v1371 = vadd.f32 %v1367, %v1370
    %vm1372 = vweird.f32 %v1351
    %vm1373 = vweird.f32 %v1367
    %vm1374 = vmor %vm1372, %vm1373
    %v1375 = vsel %vm1374, %v1367, %v1371
    %v1376 = vand.u32 2147483647, %v1351
    %vm1377 = vcmp.eq.f32.partialorder %v1376, 8.507059e+37
    %v1378 = vand.u32 %v1351, 2147483648
    %v1379 = vor.u32 1.1754944e-38, %v1378
    %v1380 = vsel %vm1377, %v1379, %v1375
    %v1381 = vmul.f32 1.0, %v1380
    %v1382 = vmul.f32 %v1296, %v1366
    %v1383 = vmul.f32 %v1297, %v1381
    %vm1384 = vcmp.ne.f32.partialorder %v1382, %v1382
    %vm1385 = vcmp.ne.f32.partialorder %v1383, %v1383
    %v1386 = vsel %vm1384, 0.0, %v1382
    %v1387 = vsel %vm1385, 0.0, %v1383
    %1388 = vst [vmem:[#allocation2 + $0x70] sm:$0xff] %v1386
    %1389 = vst [vmem:[#allocation2 + $0x78] sm:$0xff] %v1387
    // Predicated region
    $region18: #{tpu_custom_call.1} parent=1 // pred_check
      _
    $region19: #{tpu_custom_call.1} parent=1 // pred_check_branch
      %1391 = sbr.rel (0) target = $region21
    $region20: #{tpu_custom_call.1} parent=1 // pred_region
      %1393 = vsyncadd [#allocation3], 0
      %s1394 = sshll.u32 [#allocation2], 4
      %s1395 = int_to_ptr.vmem [resolvable:$true] %s1394
      %s1396 = sshll.u32 %s4, 4
      %s1397 = int_to_ptr.hbm [resolvable:$true] %s1396
      %1402 = dma.vmem_to_hbm [thread:$0]  %s1395, 2048, %s1397, [#allocation3], 256, 256, 16
    $region21: #{tpu_custom_call.1} parent=1 // pred_fallthru
      _
    // Predicated region
    $region22: #{tpu_custom_call.1} parent=1 // pred_check
      _
    $region23: #{tpu_custom_call.1} parent=1 // pred_check_branch
      %1404 = sbr.rel (0) target = $region25
    $region24: #{tpu_custom_call.1} parent=1 // pred_region
      %1406 = dma.done [#allocation3], 2048
    $region25: #{tpu_custom_call.1} parent=1 // pred_fallthru
      _
    %1407 = vsyncpa [#allocation3], 1

</llo_original>
